<compile_context>
chip_gen: v7x
topology: tpu7x:2x2x1
jax: 0.10.0
libtpu: 0.0.40
codegen_flags: <defaults>
</compile_context>

<pallas_src>
import functools

import jax
import jax.numpy as jnp
from jax.experimental import pallas as pl
from jax.experimental.pallas import tpu as pltpu


def lstm_classifier_kernel(emb_ref, w_ih_ref, w_hh_ref, b_ref,
                           w_cls_ref, b_cls_ref, out_ref,
                           h_scr, c_scr, xg_scr, *, seq_len, chunk, b_blk):
    """Grid = (batch_blocks ["parallel"], time_chunks ["arbitrary"]).

    emb_ref:   (chunk*Bb, E)  bf16 time-major embedded tokens for this (batch-block, chunk)
    w_ih_ref:  (E, 4H)        bf16 input->gates weights (pre-transposed)
    w_hh_ref:  (H, 4H)        fp32 hidden->gates weights (pre-transposed)
    b_ref:     (1, 4H)        fp32 b_ih + b_hh
    w_cls_ref: (H, Cp)        fp32 classifier weight (pre-transposed, lane-padded to 128)
    b_cls_ref: (1, Cp)        fp32 classifier bias (lane-padded)
    out_ref:   (Bb, Cp)       logits block (written only on the last time chunk)
    h_scr/c_scr: (Bb, H)      recurrent state carried across time chunks (VMEM scratch)
    xg_scr:    (chunk*Bb, 4H) staged input projection for the whole chunk (VMEM scratch)
    """
    t_step = pl.program_id(1)
    num_t = pl.num_programs(1)
    H = w_hh_ref.shape[0]
    B = b_blk

    @pl.when(t_step == 0)
    def _():
        h_scr[...] = jnp.zeros_like(h_scr)
        c_scr[...] = jnp.zeros_like(c_scr)

    # Hoisted input projection: all `chunk` timesteps in ONE bf16 MXU matmul (fp32 acc),
    # staged into VMEM scratch so the unrolled recurrence only keeps 1 vreg of it live.
    xg_scr[...] = (jnp.dot(emb_ref[...], w_ih_ref[...],
                           preferred_element_type=jnp.float32)
                   + b_ref[...])                                      # (chunk*Bb, 4H)

    w_hh = w_hh_ref[...]
    base_t = t_step * chunk

    def body(t, carry):
        h, c = carry
        row = pl.multiple_of(t * B, B)
        gates = xg_scr[pl.ds(row, B), :] + jnp.dot(
            h, w_hh, preferred_element_type=jnp.float32)              # (Bb, 4H)
        # 2 full-width EUP passes instead of 4 quarter-width ones (each sub-width
        # transcendental costs a full vreg pass anyway).
        sig = jax.nn.sigmoid(gates)
        tnh = jnp.tanh(gates)
        i_g = sig[:, 0 * H:1 * H]
        f_g = sig[:, 1 * H:2 * H]
        g_g = tnh[:, 2 * H:3 * H]
        o_g = sig[:, 3 * H:4 * H]
        c_new = f_g * c + i_g * g_g
        h_new = o_g * jnp.tanh(c_new)                                 # 3rd EUP pass
        # Tail masking for the zero-padded timesteps of the last chunk (cheap scalar
        # predicate select on (Bb, H) tiles).
        valid = (base_t + t) < seq_len
        h = jnp.where(valid, h_new, h)
        c = jnp.where(valid, c_new, c)
        return h, c

    h, c = jax.lax.fori_loop(0, chunk, body, (h_scr[...], c_scr[...]),
                             unroll=min(8, chunk))
    h_scr[...] = h
    c_scr[...] = c

    # Finalize: hidden[-1] -> dropout (eval-mode identity) -> Linear.
    @pl.when(t_step == num_t - 1)
    def _():
        out_ref[...] = (jnp.dot(h, w_cls_ref[...],
                                preferred_element_type=jnp.float32)
                        + b_cls_ref[...])


def forward(tokens, params, *, chunk_size=128):
    """tokens: (B, S) int32 token ids.  Returns (B, C) fp32 logits."""
    B, S = tokens.shape
    E = params["embedding"].shape[1]
    H = params["w_hh"].shape[1]
    C = params["b_cls"].shape[0]

    B_pad = ((B + 7) // 8) * 8                       # fp32 sublane width
    C_pad = ((C + 127) // 128) * 128                 # lane-dense output store
    chunk = max(1, min(chunk_size, S))
    num_chunks = pl.cdiv(S, chunk)
    S_pad = num_chunks * chunk

    # Batch-block ("parallel") axis: split into two sublane-aligned halves when possible so
    # v7x's second TensorCore gets work; single block otherwise (no effect on v5e/v6e).
    b_blk = B_pad // 2 if B_pad % 16 == 0 else B_pad
    n_b_blocks = B_pad // b_blk

    # Embedding gather directly in time-major order, in bf16 (halves streamed HBM bytes),
    # padded to (S_pad, B_pad, E) and laid out as (b_block, time, row, E) so every
    # (batch-block, time-chunk) grid cell is one contiguous 2-D tile.
    # TODO(synk): with E=32 only 32/128 lanes are used per row; acceptable at these dims.
    emb_tm = jnp.take(params["embedding"].astype(jnp.bfloat16), tokens.T, axis=0)  # (S,B,E)
    emb_tm = jnp.pad(emb_tm, ((0, S_pad - S), (0, B_pad - B), (0, 0)))
    emb_slab = (emb_tm.reshape(S_pad, n_b_blocks, b_blk, E)
                      .transpose(1, 0, 2, 3)
                      .reshape(n_b_blocks * S_pad * b_blk, E))                      # (.,E)

    w_ih_t = params["w_ih"].T.astype(jnp.bfloat16)                        # (E, 4H) bf16
    w_hh_t = params["w_hh"].T.astype(jnp.float32)                         # (H, 4H) fp32
    b = (params["b_ih"] + params["b_hh"]).astype(jnp.float32)[None, :]    # (1, 4H)
    w_cls_t = jnp.zeros((H, C_pad), jnp.float32).at[:, :C].set(
        params["w_cls"].T.astype(jnp.float32))                            # (H, Cp)
    b_cls = jnp.zeros((1, C_pad), jnp.float32).at[:, :C].set(
        params["b_cls"].astype(jnp.float32)[None, :])                     # (1, Cp)

    kernel = functools.partial(lstm_classifier_kernel,
                               seq_len=S, chunk=chunk, b_blk=b_blk)

    # VMEM budget (bytes): emb chunk is double-buffered by its BlockSpec; revisited weight
    # blocks conservatively counted x2; plus output block and scratch.
    need = (2 * chunk * b_blk * E * 2                       # emb chunk (bf16, double-buffered)
            + 2 * (E * 4 * H * 2 + (H + 1) * 4 * H * 4)     # w_ih (bf16) + w_hh + bias
            + 2 * (H + 1) * C_pad * 4                       # classifier weight + bias
            + 2 * b_blk * C_pad * 4                         # output block
            + 2 * b_blk * H * 4                             # h/c carry scratch
            + chunk * b_blk * 4 * H * 4)                    # staged x_gates scratch
    try:
        vmem_cap = getattr(pltpu.get_tpu_info(), "vmem_capacity_bytes",
                           64 * 1024 * 1024)
    except Exception:  # pragma: no cover - conservative fallback (v7x physical VMEM)
        vmem_cap = 64 * 1024 * 1024
    vmem_limit = int(min(vmem_cap - 8 * 1024 * 1024,
                         max(16 * 1024 * 1024, 2 * need)))

    out_padded = pl.pallas_call(
        kernel,
        out_shape=jax.ShapeDtypeStruct((B_pad, C_pad), jnp.float32),
        grid_spec=pltpu.PrefetchScalarGridSpec(
            num_scalar_prefetch=0,
            grid=(n_b_blocks, num_chunks),
            in_specs=[
                pl.BlockSpec((chunk * b_blk, E),
                             lambda b_i, t: (b_i * num_chunks + t, 0)),   # emb chunk
                pl.BlockSpec((E, 4 * H), lambda b_i, t: (0, 0)),          # w_ih (bf16)
                pl.BlockSpec((H, 4 * H), lambda b_i, t: (0, 0)),          # w_hh
                pl.BlockSpec((1, 4 * H), lambda b_i, t: (0, 0)),          # bias
                pl.BlockSpec((H, C_pad), lambda b_i, t: (0, 0)),          # w_cls
                pl.BlockSpec((1, C_pad), lambda b_i, t: (0, 0)),          # b_cls
            ],
            out_specs=pl.BlockSpec((b_blk, C_pad), lambda b_i, t: (b_i, 0)),
            scratch_shapes=[pltpu.VMEM((b_blk, H), jnp.float32),          # h carry
                            pltpu.VMEM((b_blk, H), jnp.float32),          # c carry
                            pltpu.VMEM((chunk * b_blk, 4 * H), jnp.float32)],  # x_gates
        ),
        compiler_params=pltpu.CompilerParams(
            dimension_semantics=("parallel", "arbitrary"),   # batch parallel, time sequential
            vmem_limit_bytes=vmem_limit,
        ),
    )(emb_slab, w_ih_t, w_hh_t, b, w_cls_t, b_cls)

    return out_padded[:B, :C]


def forward_ref(tokens, params):
    """Pure-JAX fp32 reference mirroring PyTorch semantics (eval mode)."""
    emb = jnp.take(params["embedding"], tokens, axis=0)        # (B, S, E)
    B, S, _ = emb.shape
    H = params["w_hh"].shape[1]
    w_ih_t = params["w_ih"].T
    w_hh_t = params["w_hh"].T
    b = params["b_ih"] + params["b_hh"]

    def step(carry, x_t):
        h, c = carry
        gates = x_t @ w_ih_t + h @ w_hh_t + b
        i_g = jax.nn.sigmoid(gates[:, 0 * H:1 * H])
        f_g = jax.nn.sigmoid(gates[:, 1 * H:2 * H])
        g_g = jnp.tanh(gates[:, 2 * H:3 * H])
        o_g = jax.nn.sigmoid(gates[:, 3 * H:4 * H])
        c = f_g * c + i_g * g_g
        h = o_g * jnp.tanh(c)
        return (h, c), None

    h0 = jnp.zeros((B, H), jnp.float32)
    c0 = jnp.zeros((B, H), jnp.float32)
    (h_final, _), _ = jax.lax.scan(step, (h0, c0), jnp.swapaxes(emb, 0, 1))
    return h_final @ params["w_cls"].T + params["b_cls"]


def init_params(key, vocab_size, embedding_dim, hidden_dim, num_classes):
    ks = jax.random.split(key, 7)
    s = 1.0 / jnp.sqrt(hidden_dim)
    return {
        "embedding": jax.random.normal(ks[0], (vocab_size, embedding_dim), jnp.float32),
        "w_ih": jax.random.uniform(ks[1], (4 * hidden_dim, embedding_dim), jnp.float32, -s, s),
        "w_hh": jax.random.uniform(ks[2], (4 * hidden_dim, hidden_dim), jnp.float32, -s, s),
        "b_ih": jax.random.uniform(ks[3], (4 * hidden_dim,), jnp.float32, -s, s),
        "b_hh": jax.random.uniform(ks[4], (4 * hidden_dim,), jnp.float32, -s, s),
        "w_cls": jax.random.uniform(ks[5], (num_classes, hidden_dim), jnp.float32, -s, s),
        "b_cls": jax.random.uniform(ks[6], (num_classes,), jnp.float32, -s, s),
    }


if __name__ == "__main__":
    vocab_size, embedding_dim, hidden_dim, num_classes = 50, 32, 32, 4
    batch, seq = 2, 8

    key = jax.random.PRNGKey(0)
    pkey, tkey = jax.random.split(key)
    params = init_params(pkey, vocab_size, embedding_dim, hidden_dim, num_classes)
    tokens = jax.random.randint(tkey, (batch, seq), 0, vocab_size, dtype=jnp.int32)

    # Tolerance is 2e-2 because the hoisted input projection uses bf16 MXU operands
    # (fp32 accumulation); the recurrent and classifier matmuls remain fp32.
    TOL = 2e-2

    logits = forward(tokens, params)
    jax.block_until_ready(logits)
    ref = forward_ref(tokens, params)
    assert logits.shape == (batch, num_classes)
    assert jnp.allclose(logits, ref, rtol=TOL, atol=TOL), "mismatch vs JAX reference"

    # Multi-chunk grid path with tail masking (S=37, chunk=16).
    tokens2 = jax.random.randint(jax.random.PRNGKey(1), (batch, 37), 0, vocab_size,
                                 dtype=jnp.int32)
    logits2 = forward(tokens2, params, chunk_size=16)
    jax.block_until_ready(logits2)
    ref2 = forward_ref(tokens2, params)
    assert jnp.allclose(logits2, ref2, rtol=TOL, atol=TOL), "mismatch (chunked path)"

    # Parallel batch-block path (B_pad=16 -> 2 blocks of 8) + tail masking.
    tokens3 = jax.random.randint(jax.random.PRNGKey(2), (16, 20), 0, vocab_size,
                                 dtype=jnp.int32)
    logits3 = forward(tokens3, params, chunk_size=8)
    jax.block_until_ready(logits3)
    ref3 = forward_ref(tokens3, params)
    assert jnp.allclose(logits3, ref3, rtol=TOL, atol=TOL), "mismatch (batch-block path)"

    print("KERNEL_OK")
</pallas_src>

<mosaic_0001>
module attributes {stable_mosaic.version = 11 : i64} {
  func.func @lstm_classifier_kernel(%arg0: i32, %arg1: i32, %arg2: memref<64x32xbf16, #tpu.memory_space<vmem>>, %arg3: memref<32x128xbf16, #tpu.memory_space<vmem>>, %arg4: memref<32x128xf32, #tpu.memory_space<vmem>>, %arg5: memref<1x128xf32, #tpu.memory_space<vmem>>, %arg6: memref<32x128xf32, #tpu.memory_space<vmem>>, %arg7: memref<1x128xf32, #tpu.memory_space<vmem>>, %arg8: memref<8x128xf32, #tpu.memory_space<vmem>>, %arg9: memref<8x32xf32, #tpu.memory_space<vmem>>, %arg10: memref<8x32xf32, #tpu.memory_space<vmem>>, %arg11: memref<64x128xf32, #tpu.memory_space<vmem>>) attributes {dimension_semantics = [#tpu.dimension_semantics<parallel>, #tpu.dimension_semantics<arbitrary>], iteration_bounds = array<i64: 1, 1>, scalar_prefetch = 0 : i64, scratch_operands = 3 : i64, tpu.core_type = #tpu.core_type<tc>, window_params = [{transform_indices = @transform_0, window_bounds = array<i64: 64, 32>}, {pipeline_mode = #tpu.pipeline_mode<synchronous>, transform_indices = @transform_1, window_bounds = array<i64: 32, 128>}, {pipeline_mode = #tpu.pipeline_mode<synchronous>, transform_indices = @transform_2, window_bounds = array<i64: 32, 128>}, {pipeline_mode = #tpu.pipeline_mode<synchronous>, transform_indices = @transform_3, window_bounds = array<i64: 1, 128>}, {pipeline_mode = #tpu.pipeline_mode<synchronous>, transform_indices = @transform_4, window_bounds = array<i64: 32, 128>}, {pipeline_mode = #tpu.pipeline_mode<synchronous>, transform_indices = @transform_5, window_bounds = array<i64: 1, 128>}, {transform_indices = @transform_6, window_bounds = array<i64: 8, 128>}]} {
    %c0_i32 = arith.constant 0 : i32
    %0 = arith.cmpi eq, %arg1, %c0_i32 : i32
    %1 = arith.extui %0 : i1 to i32
    %c0_i32_0 = arith.constant 0 : i32
    %2 = arith.cmpi ne, %1, %c0_i32_0 : i32
    scf.if %2 {
      %cst_62 = arith.constant 0.000000e+00 : f32
      %219 = vector.broadcast %cst_62 : f32 to vector<8x32xf32>
      %c0_63 = arith.constant 0 : index
      %c0_64 = arith.constant 0 : index
      %220 = vector.load %arg9[%c0_63, %c0_64] : memref<8x32xf32, #tpu.memory_space<vmem>>, vector<8x32xf32>
      tpu.vector_store %arg9[%c0_63, %c0_64], %219 {strides = array<i32>} : memref<8x32xf32, #tpu.memory_space<vmem>>, vector<8x32xf32>,
      %cst_65 = arith.constant 0.000000e+00 : f32
      %221 = vector.broadcast %cst_65 : f32 to vector<8x32xf32>
      %c0_66 = arith.constant 0 : index
      %c0_67 = arith.constant 0 : index
      %222 = vector.load %arg10[%c0_66, %c0_67] : memref<8x32xf32, #tpu.memory_space<vmem>>, vector<8x32xf32>
      tpu.vector_store %arg10[%c0_66, %c0_67], %221 {strides = array<i32>} : memref<8x32xf32, #tpu.memory_space<vmem>>, vector<8x32xf32>,
    } else {
    }
    %c0 = arith.constant 0 : index
    %c0_1 = arith.constant 0 : index
    %3 = vector.load %arg2[%c0, %c0_1] : memref<64x32xbf16, #tpu.memory_space<vmem>>, vector<64x32xbf16>
    %c0_2 = arith.constant 0 : index
    %c0_3 = arith.constant 0 : index
    %4 = vector.load %arg3[%c0_2, %c0_3] : memref<32x128xbf16, #tpu.memory_space<vmem>>, vector<32x128xbf16>
    %cst = arith.constant dense<0.000000e+00> : vector<64x128xf32>
    %5 = tpu.matmul %3, %4, %cst {dimension_numbers = #tpu.dot_dimension_numbers<[1], [0], [0], [1], [0, 0, 1, 1], [], []>} : vector<64x32xbf16>, vector<32x128xbf16>, vector<64x128xf32> -> vector<64x128xf32>
    %c0_4 = arith.constant 0 : index
    %c0_5 = arith.constant 0 : index
    %6 = vector.load %arg5[%c0_4, %c0_5] : memref<1x128xf32, #tpu.memory_space<vmem>>, vector<1x128xf32>
    %7 = vector.broadcast %6 : vector<1x128xf32> to vector<64x128xf32>
    %8 = arith.addf %5, %7 : vector<64x128xf32>
    %c0_6 = arith.constant 0 : index
    %c0_7 = arith.constant 0 : index
    %9 = vector.load %arg11[%c0_6, %c0_7] : memref<64x128xf32, #tpu.memory_space<vmem>>, vector<64x128xf32>
    tpu.vector_store %arg11[%c0_6, %c0_7], %8 {strides = array<i32>} : memref<64x128xf32, #tpu.memory_space<vmem>>, vector<64x128xf32>,
    %c0_8 = arith.constant 0 : index
    %c0_9 = arith.constant 0 : index
    %10 = vector.load %arg4[%c0_8, %c0_9] : memref<32x128xf32, #tpu.memory_space<vmem>>, vector<32x128xf32>
    %c8_i32 = arith.constant 8 : i32
    %11 = arith.muli %arg1, %c8_i32 : i32
    %c0_10 = arith.constant 0 : index
    %c0_11 = arith.constant 0 : index
    %12 = vector.load %arg9[%c0_10, %c0_11] : memref<8x32xf32, #tpu.memory_space<vmem>>, vector<8x32xf32>
    %c0_12 = arith.constant 0 : index
    %c0_13 = arith.constant 0 : index
    %13 = vector.load %arg10[%c0_12, %c0_13] : memref<8x32xf32, #tpu.memory_space<vmem>>, vector<8x32xf32>
    %c0_i32_14 = arith.constant 0 : i32
    %c8_i32_15 = arith.constant 8 : i32
    %14 = arith.muli %c0_i32_14, %c8_i32_15 : i32
    %15 = tpu.assume_multiple %14, 8 : i32
    %16 = arith.index_cast %15 : i32 to index
    %c0_16 = arith.constant 0 : index
    %17 = vector.load %arg11[%16, %c0_16] : memref<64x128xf32, #tpu.memory_space<vmem>>, vector<8x128xf32>
    %cst_17 = arith.constant dense<0.000000e+00> : vector<8x128xf32>
    %18 = tpu.matmul %12, %10, %cst_17 {dimension_numbers = #tpu.dot_dimension_numbers<[1], [0], [0], [1], [0, 0, 1, 1], [], []>} : vector<8x32xf32>, vector<32x128xf32>, vector<8x128xf32> -> vector<8x128xf32>
    %19 = arith.addf %17, %18 : vector<8x128xf32>
    %20 = arith.negf %19 : vector<8x128xf32>
    %21 = math.exp %20 : vector<8x128xf32>
    %cst_18 = arith.constant 1.000000e+00 : f32
    %22 = vector.broadcast %cst_18 : f32 to vector<8x128xf32>
    %23 = arith.addf %22, %21 : vector<8x128xf32>
    %24 = arith.divf %22, %23 : vector<8x128xf32>
    %25 = math.tanh %19 : vector<8x128xf32>
    %26 = vector.extract_strided_slice %24 {offsets = [0, 0], sizes = [8, 32], strides = [1, 1]} : vector<8x128xf32> to vector<8x32xf32>
    %27 = vector.extract_strided_slice %24 {offsets = [0, 32], sizes = [8, 32], strides = [1, 1]} : vector<8x128xf32> to vector<8x32xf32>
    %28 = vector.extract_strided_slice %25 {offsets = [0, 64], sizes = [8, 32], strides = [1, 1]} : vector<8x128xf32> to vector<8x32xf32>
    %29 = vector.extract_strided_slice %24 {offsets = [0, 96], sizes = [8, 32], strides = [1, 1]} : vector<8x128xf32> to vector<8x32xf32>
    %30 = arith.mulf %27, %13 : vector<8x32xf32>
    %31 = arith.mulf %26, %28 : vector<8x32xf32>
    %32 = arith.addf %30, %31 : vector<8x32xf32>
    %33 = math.tanh %32 : vector<8x32xf32>
    %34 = arith.mulf %29, %33 : vector<8x32xf32>
    %35 = arith.addi %11, %c0_i32_14 : i32
    %c8_i32_19 = arith.constant 8 : i32
    %36 = arith.cmpi slt, %35, %c8_i32_19 : i32
    %37 = arith.select %36, %34, %12 : vector<8x32xf32>
    %38 = arith.select %36, %32, %13 : vector<8x32xf32>
    %c1_i32 = arith.constant 1 : i32
    %c8_i32_20 = arith.constant 8 : i32
    %39 = arith.muli %c1_i32, %c8_i32_20 : i32
    %40 = tpu.assume_multiple %39, 8 : i32
    %41 = arith.index_cast %40 : i32 to index
    %c0_21 = arith.constant 0 : index
    %42 = vector.load %arg11[%41, %c0_21] : memref<64x128xf32, #tpu.memory_space<vmem>>, vector<8x128xf32>
    %cst_22 = arith.constant dense<0.000000e+00> : vector<8x128xf32>
    %43 = tpu.matmul %37, %10, %cst_22 {dimension_numbers = #tpu.dot_dimension_numbers<[1], [0], [0], [1], [0, 0, 1, 1], [], []>} : vector<8x32xf32>, vector<32x128xf32>, vector<8x128xf32> -> vector<8x128xf32>
    %44 = arith.addf %42, %43 : vector<8x128xf32>
    %45 = arith.negf %44 : vector<8x128xf32>
    %46 = math.exp %45 : vector<8x128xf32>
    %cst_23 = arith.constant 1.000000e+00 : f32
    %47 = vector.broadcast %cst_23 : f32 to vector<8x128xf32>
    %48 = arith.addf %47, %46 : vector<8x128xf32>
    %49 = arith.divf %47, %48 : vector<8x128xf32>
    %50 = math.tanh %44 : vector<8x128xf32>
    %51 = vector.extract_strided_slice %49 {offsets = [0, 0], sizes = [8, 32], strides = [1, 1]} : vector<8x128xf32> to vector<8x32xf32>
    %52 = vector.extract_strided_slice %49 {offsets = [0, 32], sizes = [8, 32], strides = [1, 1]} : vector<8x128xf32> to vector<8x32xf32>
    %53 = vector.extract_strided_slice %50 {offsets = [0, 64], sizes = [8, 32], strides = [1, 1]} : vector<8x128xf32> to vector<8x32xf32>
    %54 = vector.extract_strided_slice %49 {offsets = [0, 96], sizes = [8, 32], strides = [1, 1]} : vector<8x128xf32> to vector<8x32xf32>
    %55 = arith.mulf %52, %38 : vector<8x32xf32>
    %56 = arith.mulf %51, %53 : vector<8x32xf32>
    %57 = arith.addf %55, %56 : vector<8x32xf32>
    %58 = math.tanh %57 : vector<8x32xf32>
    %59 = arith.mulf %54, %58 : vector<8x32xf32>
    %60 = arith.addi %11, %c1_i32 : i32
    %c8_i32_24 = arith.constant 8 : i32
    %61 = arith.cmpi slt, %60, %c8_i32_24 : i32
    %62 = arith.select %61, %59, %37 : vector<8x32xf32>
    %63 = arith.select %61, %57, %38 : vector<8x32xf32>
    %c2_i32 = arith.constant 2 : i32
    %c8_i32_25 = arith.constant 8 : i32
    %64 = arith.muli %c2_i32, %c8_i32_25 : i32
    %65 = tpu.assume_multiple %64, 8 : i32
    %66 = arith.index_cast %65 : i32 to index
    %c0_26 = arith.constant 0 : index
    %67 = vector.load %arg11[%66, %c0_26] : memref<64x128xf32, #tpu.memory_space<vmem>>, vector<8x128xf32>
    %cst_27 = arith.constant dense<0.000000e+00> : vector<8x128xf32>
    %68 = tpu.matmul %62, %10, %cst_27 {dimension_numbers = #tpu.dot_dimension_numbers<[1], [0], [0], [1], [0, 0, 1, 1], [], []>} : vector<8x32xf32>, vector<32x128xf32>, vector<8x128xf32> -> vector<8x128xf32>
    %69 = arith.addf %67, %68 : vector<8x128xf32>
    %70 = arith.negf %69 : vector<8x128xf32>
    %71 = math.exp %70 : vector<8x128xf32>
    %cst_28 = arith.constant 1.000000e+00 : f32
    %72 = vector.broadcast %cst_28 : f32 to vector<8x128xf32>
    %73 = arith.addf %72, %71 : vector<8x128xf32>
    %74 = arith.divf %72, %73 : vector<8x128xf32>
    %75 = math.tanh %69 : vector<8x128xf32>
    %76 = vector.extract_strided_slice %74 {offsets = [0, 0], sizes = [8, 32], strides = [1, 1]} : vector<8x128xf32> to vector<8x32xf32>
    %77 = vector.extract_strided_slice %74 {offsets = [0, 32], sizes = [8, 32], strides = [1, 1]} : vector<8x128xf32> to vector<8x32xf32>
    %78 = vector.extract_strided_slice %75 {offsets = [0, 64], sizes = [8, 32], strides = [1, 1]} : vector<8x128xf32> to vector<8x32xf32>
    %79 = vector.extract_strided_slice %74 {offsets = [0, 96], sizes = [8, 32], strides = [1, 1]} : vector<8x128xf32> to vector<8x32xf32>
    %80 = arith.mulf %77, %63 : vector<8x32xf32>
    %81 = arith.mulf %76, %78 : vector<8x32xf32>
    %82 = arith.addf %80, %81 : vector<8x32xf32>
    %83 = math.tanh %82 : vector<8x32xf32>
    %84 = arith.mulf %79, %83 : vector<8x32xf32>
    %85 = arith.addi %11, %c2_i32 : i32
    %c8_i32_29 = arith.constant 8 : i32
    %86 = arith.cmpi slt, %85, %c8_i32_29 : i32
    %87 = arith.select %86, %84, %62 : vector<8x32xf32>
    %88 = arith.select %86, %82, %63 : vector<8x32xf32>
    %c3_i32 = arith.constant 3 : i32
    %c8_i32_30 = arith.constant 8 : i32
    %89 = arith.muli %c3_i32, %c8_i32_30 : i32
    %90 = tpu.assume_multiple %89, 8 : i32
    %91 = arith.index_cast %90 : i32 to index
    %c0_31 = arith.constant 0 : index
    %92 = vector.load %arg11[%91, %c0_31] : memref<64x128xf32, #tpu.memory_space<vmem>>, vector<8x128xf32>
    %cst_32 = arith.constant dense<0.000000e+00> : vector<8x128xf32>
    %93 = tpu.matmul %87, %10, %cst_32 {dimension_numbers = #tpu.dot_dimension_numbers<[1], [0], [0], [1], [0, 0, 1, 1], [], []>} : vector<8x32xf32>, vector<32x128xf32>, vector<8x128xf32> -> vector<8x128xf32>
    %94 = arith.addf %92, %93 : vector<8x128xf32>
    %95 = arith.negf %94 : vector<8x128xf32>
    %96 = math.exp %95 : vector<8x128xf32>
    %cst_33 = arith.constant 1.000000e+00 : f32
    %97 = vector.broadcast %cst_33 : f32 to vector<8x128xf32>
    %98 = arith.addf %97, %96 : vector<8x128xf32>
    %99 = arith.divf %97, %98 : vector<8x128xf32>
    %100 = math.tanh %94 : vector<8x128xf32>
    %101 = vector.extract_strided_slice %99 {offsets = [0, 0], sizes = [8, 32], strides = [1, 1]} : vector<8x128xf32> to vector<8x32xf32>
    %102 = vector.extract_strided_slice %99 {offsets = [0, 32], sizes = [8, 32], strides = [1, 1]} : vector<8x128xf32> to vector<8x32xf32>
    %103 = vector.extract_strided_slice %100 {offsets = [0, 64], sizes = [8, 32], strides = [1, 1]} : vector<8x128xf32> to vector<8x32xf32>
    %104 = vector.extract_strided_slice %99 {offsets = [0, 96], sizes = [8, 32], strides = [1, 1]} : vector<8x128xf32> to vector<8x32xf32>
    %105 = arith.mulf %102, %88 : vector<8x32xf32>
    %106 = arith.mulf %101, %103 : vector<8x32xf32>
    %107 = arith.addf %105, %106 : vector<8x32xf32>
    %108 = math.tanh %107 : vector<8x32xf32>
    %109 = arith.mulf %104, %108 : vector<8x32xf32>
    %110 = arith.addi %11, %c3_i32 : i32
    %c8_i32_34 = arith.constant 8 : i32
    %111 = arith.cmpi slt, %110, %c8_i32_34 : i32
    %112 = arith.select %111, %109, %87 : vector<8x32xf32>
    %113 = arith.select %111, %107, %88 : vector<8x32xf32>
    %c4_i32 = arith.constant 4 : i32
    %c8_i32_35 = arith.constant 8 : i32
    %114 = arith.muli %c4_i32, %c8_i32_35 : i32
    %115 = tpu.assume_multiple %114, 8 : i32
    %116 = arith.index_cast %115 : i32 to index
    %c0_36 = arith.constant 0 : index
    %117 = vector.load %arg11[%116, %c0_36] : memref<64x128xf32, #tpu.memory_space<vmem>>, vector<8x128xf32>
    %cst_37 = arith.constant dense<0.000000e+00> : vector<8x128xf32>
    %118 = tpu.matmul %112, %10, %cst_37 {dimension_numbers = #tpu.dot_dimension_numbers<[1], [0], [0], [1], [0, 0, 1, 1], [], []>} : vector<8x32xf32>, vector<32x128xf32>, vector<8x128xf32> -> vector<8x128xf32>
    %119 = arith.addf %117, %118 : vector<8x128xf32>
    %120 = arith.negf %119 : vector<8x128xf32>
    %121 = math.exp %120 : vector<8x128xf32>
    %cst_38 = arith.constant 1.000000e+00 : f32
    %122 = vector.broadcast %cst_38 : f32 to vector<8x128xf32>
    %123 = arith.addf %122, %121 : vector<8x128xf32>
    %124 = arith.divf %122, %123 : vector<8x128xf32>
    %125 = math.tanh %119 : vector<8x128xf32>
    %126 = vector.extract_strided_slice %124 {offsets = [0, 0], sizes = [8, 32], strides = [1, 1]} : vector<8x128xf32> to vector<8x32xf32>
    %127 = vector.extract_strided_slice %124 {offsets = [0, 32], sizes = [8, 32], strides = [1, 1]} : vector<8x128xf32> to vector<8x32xf32>
    %128 = vector.extract_strided_slice %125 {offsets = [0, 64], sizes = [8, 32], strides = [1, 1]} : vector<8x128xf32> to vector<8x32xf32>
    %129 = vector.extract_strided_slice %124 {offsets = [0, 96], sizes = [8, 32], strides = [1, 1]} : vector<8x128xf32> to vector<8x32xf32>
    %130 = arith.mulf %127, %113 : vector<8x32xf32>
    %131 = arith.mulf %126, %128 : vector<8x32xf32>
    %132 = arith.addf %130, %131 : vector<8x32xf32>
    %133 = math.tanh %132 : vector<8x32xf32>
    %134 = arith.mulf %129, %133 : vector<8x32xf32>
    %135 = arith.addi %11, %c4_i32 : i32
    %c8_i32_39 = arith.constant 8 : i32
    %136 = arith.cmpi slt, %135, %c8_i32_39 : i32
    %137 = arith.select %136, %134, %112 : vector<8x32xf32>
    %138 = arith.select %136, %132, %113 : vector<8x32xf32>
    %c5_i32 = arith.constant 5 : i32
    %c8_i32_40 = arith.constant 8 : i32
    %139 = arith.muli %c5_i32, %c8_i32_40 : i32
    %140 = tpu.assume_multiple %139, 8 : i32
    %141 = arith.index_cast %140 : i32 to index
    %c0_41 = arith.constant 0 : index
    %142 = vector.load %arg11[%141, %c0_41] : memref<64x128xf32, #tpu.memory_space<vmem>>, vector<8x128xf32>
    %cst_42 = arith.constant dense<0.000000e+00> : vector<8x128xf32>
    %143 = tpu.matmul %137, %10, %cst_42 {dimension_numbers = #tpu.dot_dimension_numbers<[1], [0], [0], [1], [0, 0, 1, 1], [], []>} : vector<8x32xf32>, vector<32x128xf32>, vector<8x128xf32> -> vector<8x128xf32>
    %144 = arith.addf %142, %143 : vector<8x128xf32>
    %145 = arith.negf %144 : vector<8x128xf32>
    %146 = math.exp %145 : vector<8x128xf32>
    %cst_43 = arith.constant 1.000000e+00 : f32
    %147 = vector.broadcast %cst_43 : f32 to vector<8x128xf32>
    %148 = arith.addf %147, %146 : vector<8x128xf32>
    %149 = arith.divf %147, %148 : vector<8x128xf32>
    %150 = math.tanh %144 : vector<8x128xf32>
    %151 = vector.extract_strided_slice %149 {offsets = [0, 0], sizes = [8, 32], strides = [1, 1]} : vector<8x128xf32> to vector<8x32xf32>
    %152 = vector.extract_strided_slice %149 {offsets = [0, 32], sizes = [8, 32], strides = [1, 1]} : vector<8x128xf32> to vector<8x32xf32>
    %153 = vector.extract_strided_slice %150 {offsets = [0, 64], sizes = [8, 32], strides = [1, 1]} : vector<8x128xf32> to vector<8x32xf32>
    %154 = vector.extract_strided_slice %149 {offsets = [0, 96], sizes = [8, 32], strides = [1, 1]} : vector<8x128xf32> to vector<8x32xf32>
    %155 = arith.mulf %152, %138 : vector<8x32xf32>
    %156 = arith.mulf %151, %153 : vector<8x32xf32>
    %157 = arith.addf %155, %156 : vector<8x32xf32>
    %158 = math.tanh %157 : vector<8x32xf32>
    %159 = arith.mulf %154, %158 : vector<8x32xf32>
    %160 = arith.addi %11, %c5_i32 : i32
    %c8_i32_44 = arith.constant 8 : i32
    %161 = arith.cmpi slt, %160, %c8_i32_44 : i32
    %162 = arith.select %161, %159, %137 : vector<8x32xf32>
    %163 = arith.select %161, %157, %138 : vector<8x32xf32>
    %c6_i32 = arith.constant 6 : i32
    %c8_i32_45 = arith.constant 8 : i32
    %164 = arith.muli %c6_i32, %c8_i32_45 : i32
    %165 = tpu.assume_multiple %164, 8 : i32
    %166 = arith.index_cast %165 : i32 to index
    %c0_46 = arith.constant 0 : index
    %167 = vector.load %arg11[%166, %c0_46] : memref<64x128xf32, #tpu.memory_space<vmem>>, vector<8x128xf32>
    %cst_47 = arith.constant dense<0.000000e+00> : vector<8x128xf32>
    %168 = tpu.matmul %162, %10, %cst_47 {dimension_numbers = #tpu.dot_dimension_numbers<[1], [0], [0], [1], [0, 0, 1, 1], [], []>} : vector<8x32xf32>, vector<32x128xf32>, vector<8x128xf32> -> vector<8x128xf32>
    %169 = arith.addf %167, %168 : vector<8x128xf32>
    %170 = arith.negf %169 : vector<8x128xf32>
    %171 = math.exp %170 : vector<8x128xf32>
    %cst_48 = arith.constant 1.000000e+00 : f32
    %172 = vector.broadcast %cst_48 : f32 to vector<8x128xf32>
    %173 = arith.addf %172, %171 : vector<8x128xf32>
    %174 = arith.divf %172, %173 : vector<8x128xf32>
    %175 = math.tanh %169 : vector<8x128xf32>
    %176 = vector.extract_strided_slice %174 {offsets = [0, 0], sizes = [8, 32], strides = [1, 1]} : vector<8x128xf32> to vector<8x32xf32>
    %177 = vector.extract_strided_slice %174 {offsets = [0, 32], sizes = [8, 32], strides = [1, 1]} : vector<8x128xf32> to vector<8x32xf32>
    %178 = vector.extract_strided_slice %175 {offsets = [0, 64], sizes = [8, 32], strides = [1, 1]} : vector<8x128xf32> to vector<8x32xf32>
    %179 = vector.extract_strided_slice %174 {offsets = [0, 96], sizes = [8, 32], strides = [1, 1]} : vector<8x128xf32> to vector<8x32xf32>
    %180 = arith.mulf %177, %163 : vector<8x32xf32>
    %181 = arith.mulf %176, %178 : vector<8x32xf32>
    %182 = arith.addf %180, %181 : vector<8x32xf32>
    %183 = math.tanh %182 : vector<8x32xf32>
    %184 = arith.mulf %179, %183 : vector<8x32xf32>
    %185 = arith.addi %11, %c6_i32 : i32
    %c8_i32_49 = arith.constant 8 : i32
    %186 = arith.cmpi slt, %185, %c8_i32_49 : i32
    %187 = arith.select %186, %184, %162 : vector<8x32xf32>
    %188 = arith.select %186, %182, %163 : vector<8x32xf32>
    %c7_i32 = arith.constant 7 : i32
    %c8_i32_50 = arith.constant 8 : i32
    %189 = arith.muli %c7_i32, %c8_i32_50 : i32
    %190 = tpu.assume_multiple %189, 8 : i32
    %191 = arith.index_cast %190 : i32 to index
    %c0_51 = arith.constant 0 : index
    %192 = vector.load %arg11[%191, %c0_51] : memref<64x128xf32, #tpu.memory_space<vmem>>, vector<8x128xf32>
    %cst_52 = arith.constant dense<0.000000e+00> : vector<8x128xf32>
    %193 = tpu.matmul %187, %10, %cst_52 {dimension_numbers = #tpu.dot_dimension_numbers<[1], [0], [0], [1], [0, 0, 1, 1], [], []>} : vector<8x32xf32>, vector<32x128xf32>, vector<8x128xf32> -> vector<8x128xf32>
    %194 = arith.addf %192, %193 : vector<8x128xf32>
    %195 = arith.negf %194 : vector<8x128xf32>
    %196 = math.exp %195 : vector<8x128xf32>
    %cst_53 = arith.constant 1.000000e+00 : f32
    %197 = vector.broadcast %cst_53 : f32 to vector<8x128xf32>
    %198 = arith.addf %197, %196 : vector<8x128xf32>
    %199 = arith.divf %197, %198 : vector<8x128xf32>
    %200 = math.tanh %194 : vector<8x128xf32>
    %201 = vector.extract_strided_slice %199 {offsets = [0, 0], sizes = [8, 32], strides = [1, 1]} : vector<8x128xf32> to vector<8x32xf32>
    %202 = vector.extract_strided_slice %199 {offsets = [0, 32], sizes = [8, 32], strides = [1, 1]} : vector<8x128xf32> to vector<8x32xf32>
    %203 = vector.extract_strided_slice %200 {offsets = [0, 64], sizes = [8, 32], strides = [1, 1]} : vector<8x128xf32> to vector<8x32xf32>
    %204 = vector.extract_strided_slice %199 {offsets = [0, 96], sizes = [8, 32], strides = [1, 1]} : vector<8x128xf32> to vector<8x32xf32>
    %205 = arith.mulf %202, %188 : vector<8x32xf32>
    %206 = arith.mulf %201, %203 : vector<8x32xf32>
    %207 = arith.addf %205, %206 : vector<8x32xf32>
    %208 = math.tanh %207 : vector<8x32xf32>
    %209 = arith.mulf %204, %208 : vector<8x32xf32>
    %210 = arith.addi %11, %c7_i32 : i32
    %c8_i32_54 = arith.constant 8 : i32
    %211 = arith.cmpi slt, %210, %c8_i32_54 : i32
    %212 = arith.select %211, %209, %187 : vector<8x32xf32>
    %213 = arith.select %211, %207, %188 : vector<8x32xf32>
    %c8_i32_55 = arith.constant 8 : i32
    %c0_56 = arith.constant 0 : index
    %c0_57 = arith.constant 0 : index
    %214 = vector.load %arg9[%c0_56, %c0_57] : memref<8x32xf32, #tpu.memory_space<vmem>>, vector<8x32xf32>
    tpu.vector_store %arg9[%c0_56, %c0_57], %212 {strides = array<i32>} : memref<8x32xf32, #tpu.memory_space<vmem>>, vector<8x32xf32>,
    %c0_58 = arith.constant 0 : index
    %c0_59 = arith.constant 0 : index
    %215 = vector.load %arg10[%c0_58, %c0_59] : memref<8x32xf32, #tpu.memory_space<vmem>>, vector<8x32xf32>
    tpu.vector_store %arg10[%c0_58, %c0_59], %213 {strides = array<i32>} : memref<8x32xf32, #tpu.memory_space<vmem>>, vector<8x32xf32>,
    %c0_i32_60 = arith.constant 0 : i32
    %216 = arith.cmpi eq, %arg1, %c0_i32_60 : i32
    %217 = arith.extui %216 : i1 to i32
    %c0_i32_61 = arith.constant 0 : i32
    %218 = arith.cmpi ne, %217, %c0_i32_61 : i32
    scf.if %218 {
      %c0_62 = arith.constant 0 : index
      %c0_63 = arith.constant 0 : index
      %219 = vector.load %arg6[%c0_62, %c0_63] : memref<32x128xf32, #tpu.memory_space<vmem>>, vector<32x128xf32>
      %cst_64 = arith.constant dense<0.000000e+00> : vector<8x128xf32>
      %220 = tpu.matmul %212, %219, %cst_64 {dimension_numbers = #tpu.dot_dimension_numbers<[1], [0], [0], [1], [0, 0, 1, 1], [], []>} : vector<8x32xf32>, vector<32x128xf32>, vector<8x128xf32> -> vector<8x128xf32>
      %c0_65 = arith.constant 0 : index
      %c0_66 = arith.constant 0 : index
      %221 = vector.load %arg7[%c0_65, %c0_66] : memref<1x128xf32, #tpu.memory_space<vmem>>, vector<1x128xf32>
      %222 = vector.broadcast %221 : vector<1x128xf32> to vector<8x128xf32>
      %223 = arith.addf %220, %222 : vector<8x128xf32>
      %c0_67 = arith.constant 0 : index
      %c0_68 = arith.constant 0 : index
      %224 = vector.load %arg8[%c0_67, %c0_68] : memref<8x128xf32, #tpu.memory_space<vmem>>, vector<8x128xf32>
      tpu.vector_store %arg8[%c0_67, %c0_68], %223 {strides = array<i32>} : memref<8x128xf32, #tpu.memory_space<vmem>>, vector<8x128xf32>,
    } else {
    }
    return
  }
  func.func @transform_0(%arg0: i32, %arg1: i32) -> (i32, i32) {
    %c1_i32 = arith.constant 1 : i32
    %0 = arith.muli %arg0, %c1_i32 : i32
    %1 = arith.addi %0, %arg1 : i32
    %c0_i32 = arith.constant 0 : i32
    %c0_i32_0 = arith.constant 0 : i32
    return %1, %c0_i32 : i32, i32
  }
  func.func @transform_1(%arg0: i32, %arg1: i32) -> (i32, i32) {
    %c0_i32 = arith.constant 0 : i32
    %c0_i32_0 = arith.constant 0 : i32
    %c0_i32_1 = arith.constant 0 : i32
    return %c0_i32, %c0_i32_0 : i32, i32
  }
  func.func @transform_2(%arg0: i32, %arg1: i32) -> (i32, i32) {
    %c0_i32 = arith.constant 0 : i32
    %c0_i32_0 = arith.constant 0 : i32
    %c0_i32_1 = arith.constant 0 : i32
    return %c0_i32, %c0_i32_0 : i32, i32
  }
  func.func @transform_3(%arg0: i32, %arg1: i32) -> (i32, i32) {
    %c0_i32 = arith.constant 0 : i32
    %c0_i32_0 = arith.constant 0 : i32
    %c0_i32_1 = arith.constant 0 : i32
    return %c0_i32, %c0_i32_0 : i32, i32
  }
  func.func @transform_4(%arg0: i32, %arg1: i32) -> (i32, i32) {
    %c0_i32 = arith.constant 0 : i32
    %c0_i32_0 = arith.constant 0 : i32
    %c0_i32_1 = arith.constant 0 : i32
    return %c0_i32, %c0_i32_0 : i32, i32
  }
  func.func @transform_5(%arg0: i32, %arg1: i32) -> (i32, i32) {
    %c0_i32 = arith.constant 0 : i32
    %c0_i32_0 = arith.constant 0 : i32
    %c0_i32_1 = arith.constant 0 : i32
    return %c0_i32, %c0_i32_0 : i32, i32
  }
  func.func @transform_6(%arg0: i32, %arg1: i32) -> (i32, i32) {
    %c0_i32 = arith.constant 0 : i32
    %c0_i32_0 = arith.constant 0 : i32
    return %arg0, %c0_i32 : i32, i32
  }
}

</mosaic_0001>

<llo_original>
// kernel: tpu_custom_call.1
$region0: #{tpu_custom_call.1}
  #allocation0 [shape = 'u32[]', space=smem, size = 0x4, offset = 0x4, fixed_abs, tag = 'smem constant byte address 0x4 - core index']
  #allocation1 [shape = 'u32[144,128]{1,0:T(1,128)}', space=vmem, size = 0x12000, scoped, tag = 'internal scratch']
  #allocation2 [shape = 'f32[8,32]{1,0:T(8,128)}', space=vmem, size = 0x1000, scoped, tag = 'scratch operand']
  #allocation3 [shape = 'f32[8,32]{1,0:T(8,128)}', space=vmem, size = 0x1000, scoped, tag = 'scratch operand']
  #allocation4 [shape = 'f32[64,128]{1,0:T(8,128)}', space=vmem, size = 0x8000, scoped, tag = 'scratch operand']
  %s0 = inlined_call_operand.vmem [shape: bf16[64,32], index: 0, kind: input, shape index: {}]
  %s1 = inlined_call_operand.vmem [shape: bf16[32,128], index: 1, kind: input, shape index: {}]
  %s2 = inlined_call_operand.vmem [shape: f32[32,128], index: 2, kind: input, shape index: {}]
  %s3 = inlined_call_operand.vmem [shape: f32[1,128], index: 3, kind: input, shape index: {}]
  %s4 = inlined_call_operand.hbm [shape: f32[32,128], index: 4, kind: input, shape index: {}]
  %s5 = inlined_call_operand.vmem [shape: f32[1,128], index: 5, kind: input, shape index: {}]
  %s6 = inlined_call_operand.hbm [shape: f32[8,128], index: 6, kind: output, shape index: {}]
  %s7 = sld [smem:[#allocation0]]
  $region46: #{tpu_custom_call.1} parent=0
    _
  %s9 = ssub.s32 1, %s7
  %s10 = scalar_select 0, %s9, %s7
  $region1: #{tpu_custom_call.1} parent=0
    #allocation5 [shape = 'u8[16384]{0}', space=vmem, size = 0x4000, scoped, tag = 'input window, operand 4, single buffered']
    #allocation6 [shape = 's32[1]{0}', space=sflag, size = 0x4, scoped, tag = 'scoped memory for tpu_custom_call.1']
    #allocation7 [shape = 's32[1]{0}', space=sflag, size = 0x4, scoped, tag = 'scoped memory for tpu_custom_call.1']
    #allocation8 [shape = 'u8[4096]{0}', space=vmem, size = 0x1000, scoped, tag = 'output window, operand 0, single buffered']
    %11 = vsyncpa [#allocation6], 0
    %12 = vsyncpa [#allocation7], 0
    // Predicated region
    $region2: #{tpu_custom_call.1} parent=1 // pred_check
      _
    $region3: #{tpu_custom_call.1} parent=1 // pred_check_branch
      %14 = sbr.rel (0) target = $region5
    $region4: #{tpu_custom_call.1} parent=1 // pred_region
      %s15 = sadd.s32 0, 0
      %s16 = smul.u32 8, %s15
      %p17 = scmp.lt.s32.totalorder %s16, 7
      %s18 = scalar_select %p17, %s16, 7
      %s19 = smul.addr %s18, 4
      %s20 = scalar_lea.vmem %s0, %s19
      %s21 = sadd.s32 0, 0
      %s22 = smul.u32 8, %s21
    $region5: #{tpu_custom_call.1} parent=1 // pred_fallthru
      _
    // Predicated region
    $region6: #{tpu_custom_call.1} parent=1 // pred_check
      _
    $region7: #{tpu_custom_call.1} parent=1 // pred_check_branch
      %24 = sbr.rel (0) target = $region9
    $region8: #{tpu_custom_call.1} parent=1 // pred_region
      _
    $region9: #{tpu_custom_call.1} parent=1 // pred_fallthru
      _
    // Predicated region
    $region10: #{tpu_custom_call.1} parent=1 // pred_check
      _
    $region11: #{tpu_custom_call.1} parent=1 // pred_check_branch
      %26 = sbr.rel (0) target = $region13
    $region12: #{tpu_custom_call.1} parent=1 // pred_region
      _
    $region13: #{tpu_custom_call.1} parent=1 // pred_fallthru
      _
    // Predicated region
    $region14: #{tpu_custom_call.1} parent=1 // pred_check
      _
    $region15: #{tpu_custom_call.1} parent=1 // pred_check_branch
      %28 = sbr.rel (0) target = $region17
    $region16: #{tpu_custom_call.1} parent=1 // pred_region
      _
    $region17: #{tpu_custom_call.1} parent=1 // pred_fallthru
      _
    // Predicated region
    $region18: #{tpu_custom_call.1} parent=1 // pred_check
      _
    $region19: #{tpu_custom_call.1} parent=1 // pred_check_branch
      %30 = sbr.rel (0) target = $region21
    $region20: #{tpu_custom_call.1} parent=1 // pred_region
      %s32 = ssub.s32 512, 512
      %33 = vsyncadd [#allocation6], %s32
      %s34 = sshll.u32 [#allocation5], 4
      %s35 = int_to_ptr.vmem [resolvable:$true] %s34
      %40 = dma.hbm_to_vmem [thread:$0]  %s4, 512, %s35, [#allocation6], 128, 128, 8
    $region21: #{tpu_custom_call.1} parent=1 // pred_fallthru
      _
    // Predicated region
    $region22: #{tpu_custom_call.1} parent=1 // pred_check
      _
    $region23: #{tpu_custom_call.1} parent=1 // pred_check_branch
      %42 = sbr.rel (0) target = $region25
    $region24: #{tpu_custom_call.1} parent=1 // pred_region
      _
    $region25: #{tpu_custom_call.1} parent=1 // pred_fallthru
      _
    // Predicated region
    $region26: #{tpu_custom_call.1} parent=1 // pred_check
      _
    $region27: #{tpu_custom_call.1} parent=1 // pred_check_branch
      %44 = sbr.rel (0) target = $region29
    $region28: #{tpu_custom_call.1} parent=1 // pred_region
      %45 = dma.done [#allocation6], 512
    $region29: #{tpu_custom_call.1} parent=1 // pred_fallthru
      _
    %s46 = sadd.s32 0, 0
    %s47 = smul.u32 8, %s46
    %p48 = scmp.lt.s32.totalorder %s47, 7
    %s49 = scalar_select %p48, %s47, 7
    %s50 = smul.addr %s49, 4
    %s51 = scalar_lea.vmem %s0, %s50
    %s52 = sadd.s32 0, 0
    %s53 = smul.u32 8, %s52
    %p54 = scmp.lt.s32.totalorder %s53, 7
    %s55 = scalar_select %p54, %s53, 7
    %s56 = smul.addr %s55, 4
    %s57 = scalar_lea.vmem %s0, %s56
    %s58 = sadd.s32 0, 0
    %s59 = smul.u32 8, %s58
    %p61 = scmp.eq.s32.totalorder 0, 0
    // Predicated region
    $region30: #{tpu_custom_call.1} parent=1 // pred_check
      %p62 = pneg %p61
    $region31: #{tpu_custom_call.1} parent=1 // pred_check_branch
      %64 = sbr.rel (%p62) target = $region33
    $region32: #{tpu_custom_call.1} parent=1 // pred_region
      %vm65 = vcmask 261120
      %66 = vst.msk [vmem:[#allocation2] sm:$0xff] %vm65, 0.0
      %67 = vst.msk [vmem:[#allocation3] sm:$0xff] %vm65, 0.0
    $region33: #{tpu_custom_call.1} parent=1 // pred_fallthru
      _
    %v68 = vld [vmem:[%s57] sm:$0xf]
    %v69 = vld [vmem:[%s57 + $0x4] sm:$0xf]
    %v70 = vld [vmem:[%s57 + $0x8] sm:$0xf]
    %v71 = vld [vmem:[%s57 + $0xc] sm:$0xf]
    %v72 = vld [vmem:[%s57 + $0x10] sm:$0xf]
    %v73 = vld [vmem:[%s57 + $0x14] sm:$0xf]
    %v74 = vld [vmem:[%s57 + $0x18] sm:$0xf]
    %v75 = vld [vmem:[%s57 + $0x1c] sm:$0xf]
    %v76 = vld [vmem:[%s1] sm:$0xf]
    %v77 = vld [vmem:[%s1 + $0x4] sm:$0xf]
    %v78 = vld [vmem:[%s1 + $0x8] sm:$0xf]
    %v79 = vld [vmem:[%s1 + $0xc] sm:$0xf]
    %v80 = vld [vmem:[%s3] sm:$0x1]
    %v82 = vlaneseq
    %v83 = vshrl.u32 %v82, 7
    %v84 = vsub.s32 0, %v83
    %v85 = vrot.slane %v80, %v84
    %v95 = vunpack.c.l.b16 %v68
    %v96 = vunpack.c.l.b16 %v69
    %v97 = vunpack.c.l.b16 %v70
    %v98 = vunpack.c.l.b16 %v71
    %v99 = vunpack.c.l.b16 %v72
    %v100 = vunpack.c.l.b16 %v73
    %v101 = vunpack.c.l.b16 %v74
    %v102 = vunpack.c.l.b16 %v75
    %v103 = vpack.c.b16 %v96, %v95
    %v104 = vpack.c.b16 %v98, %v97
    %v105 = vpack.c.b16 %v100, %v99
    %v106 = vpack.c.b16 %v102, %v101
    %v111 = vunpack.c.l.b16 %v76
    %v112 = vunpack.c.l.b16 %v77
    %v113 = vunpack.c.l.b16 %v78
    %v114 = vunpack.c.l.b16 %v79
    %v115 = vpack.c.b16 %v112, %v111
    %v116 = vpack.c.b16 %v114, %v113
    %vm119 = vcmask 261120
    %v121 = vsel %vm119, %v103, 0
    %v124 = vsel %vm119, %v104, 0
    %v127 = vsel %vm119, %v105, 0
    %v130 = vsel %vm119, %v106, 0
    %132 = vmatprep.subr.bf16.mxu0 0
    %133 = vmatpush1.bf16.msra.mxu0 %v115
    %134 = vmatprep.subr.bf16.mxu0 0
    %135 = vmatpush1.bf16.msra.mxu0 %v116
    %136 = vmatprep.subr.bf16.mxu0 0
    %137 = vmatpush1.bf16.msra.mxu0 0
    %138 = vmatprep.subr.bf16.mxu0 0
    %139 = vmatpush1.bf16.msra.mxu0 0
    %140 = vmatprep.subr.bf16.mxu0 0
    %141 = vmatpush1.bf16.msra.mxu0 0
    %142 = vmatprep.subr.bf16.mxu0 0
    %143 = vmatpush1.bf16.msra.mxu0 0
    %144 = vmatprep.subr.bf16.mxu0 0
    %145 = vmatpush1.bf16.msra.mxu0 0
    %146 = vmatprep.subr.bf16.mxu0 0
    %147 = vmatpush1.bf16.msra.mxu0 0
    %148 = vmatprep.subr.bf16.mxu0 0
    %149 = vmatpush1.bf16.msra.mxu0 0
    %150 = vmatprep.subr.bf16.mxu0 0
    %151 = vmatpush1.bf16.msra.mxu0 0
    %152 = vmatprep.subr.bf16.mxu0 0
    %153 = vmatpush1.bf16.msra.mxu0 0
    %154 = vmatprep.subr.bf16.mxu0 0
    %155 = vmatpush1.bf16.msra.mxu0 0
    %156 = vmatprep.subr.bf16.mxu0 0
    %157 = vmatpush1.bf16.msra.mxu0 0
    %158 = vmatprep.subr.bf16.mxu0 0
    %159 = vmatpush1.bf16.msra.mxu0 0
    %160 = vmatprep.subr.bf16.mxu0 0
    %161 = vmatpush1.bf16.msra.mxu0 0
    %162 = vmatprep.subr.bf16.mxu0 0
    %163 = vmatpush1.bf16.msra.mxu0 0
    %164 = vmatprep.mubr.bf16.mxu0 0
    %165 = vmatmul.mubr.bf16.gmra.mrb[0].mxu0 %v121
    %v166 = vpop.f32.mrb[0].mxu0
    %v167 = vadd.f32 %v85, %v166
    %v168 = vpop.f32.mrb[0].mxu0
    %v169 = vpop.f32.mrb[0].mxu0
    %v170 = vadd.f32 %v85, %v169
    %v171 = vpop.f32.mrb[0].mxu0
    %172 = vmatprep.mubr.bf16.mxu0 0
    %173 = vmatmul.mubr.bf16.gmra.mrb[0].mxu0 %v124
    %v174 = vpop.f32.mrb[0].mxu0
    %v175 = vadd.f32 %v85, %v174
    %v176 = vpop.f32.mrb[0].mxu0
    %v177 = vpop.f32.mrb[0].mxu0
    %v178 = vadd.f32 %v85, %v177
    %v179 = vpop.f32.mrb[0].mxu0
    %180 = vmatprep.mubr.bf16.mxu0 0
    %181 = vmatmul.mubr.bf16.gmra.mrb[0].mxu0 %v127
    %v182 = vpop.f32.mrb[0].mxu0
    %v183 = vadd.f32 %v85, %v182
    %v184 = vpop.f32.mrb[0].mxu0
    %v185 = vpop.f32.mrb[0].mxu0
    %v186 = vadd.f32 %v85, %v185
    %v187 = vpop.f32.mrb[0].mxu0
    %188 = vmatprep.mubr.bf16.mxu0 0
    %189 = vmatmul.mubr.bf16.gmra.mrb[0].mxu0 %v130
    %v190 = vpop.f32.mrb[0].mxu0
    %v191 = vadd.f32 %v85, %v190
    %v192 = vpop.f32.mrb[0].mxu0
    %v193 = vpop.f32.mrb[0].mxu0
    %v194 = vadd.f32 %v85, %v193
    %v195 = vpop.f32.mrb[0].mxu0
    %196 = vdwg.mxu0
    %197 = vst [vmem:[#allocation4] sm:$0xff] %v167
    %198 = vst [vmem:[#allocation4 + $0x8] sm:$0xff] %v170
    %199 = vst [vmem:[#allocation4 + $0x10] sm:$0xff] %v175
    %200 = vst [vmem:[#allocation4 + $0x18] sm:$0xff] %v178
    %201 = vst [vmem:[#allocation4 + $0x20] sm:$0xff] %v183
    %202 = vst [vmem:[#allocation4 + $0x28] sm:$0xff] %v186
    %203 = vst [vmem:[#allocation4 + $0x30] sm:$0xff] %v191
    %204 = vst [vmem:[#allocation4 + $0x38] sm:$0xff] %v194
    %v205 = vld [vmem:[%s2] sm:$0xff]
    %v206 = vld [vmem:[%s2 + $0x8] sm:$0xff]
    %v207 = vld [vmem:[%s2 + $0x10] sm:$0xff]
    %v208 = vld [vmem:[%s2 + $0x18] sm:$0xff]
    %s209 = smul.u32 0, 8
    %v210 = vld [vmem:[#allocation2] sm:$0xff]
    %v211 = vld [vmem:[#allocation3] sm:$0xff]
    %v212 = vld [vmem:[#allocation4] sm:$0xff]
    %v214 = vsel %vm119, %v210, 0
    %216 = vmatprep.subr.mxu0 0.0
    %217 = vmatpush1.msra.mxu0 %v205
    %218 = vmatprep.subr.mxu0 0.0
    %219 = vmatpush1.msra.mxu0 %v206
    %220 = vmatprep.subr.mxu0 0.0
    %221 = vmatpush1.msra.mxu0 %v207
    %222 = vmatprep.subr.mxu0 0.0
    %223 = vmatpush1.msra.mxu0 %v208
    %224 = vmatprep.subr.mxu0 0.0
    %225 = vmatpush1.msra.mxu0 0.0
    %226 = vmatprep.subr.mxu0 0.0
    %227 = vmatpush1.msra.mxu0 0.0
    %228 = vmatprep.subr.mxu0 0.0
    %229 = vmatpush1.msra.mxu0 0.0
    %230 = vmatprep.subr.mxu0 0.0
    %231 = vmatpush1.msra.mxu0 0.0
    %232 = vmatprep.subr.mxu0 0.0
    %233 = vmatpush1.msra.mxu0 0.0
    %234 = vmatprep.subr.mxu0 0.0
    %235 = vmatpush1.msra.mxu0 0.0
    %236 = vmatprep.subr.mxu0 0.0
    %237 = vmatpush1.msra.mxu0 0.0
    %238 = vmatprep.subr.mxu0 0.0
    %239 = vmatpush1.msra.mxu0 0.0
    %240 = vmatprep.subr.mxu0 0.0
    %241 = vmatpush1.msra.mxu0 0.0
    %242 = vmatprep.subr.mxu0 0.0
    %243 = vmatpush1.msra.mxu0 0.0
    %244 = vmatprep.subr.mxu0 0.0
    %245 = vmatpush1.msra.mxu0 0.0
    %246 = vmatprep.subr.mxu0 0.0
    %247 = vmatpush1.msra.mxu0 0.0
    %248 = vmatprep.subr.mxu0 0.0
    %249 = vmatpush1.msra.mxu0 0.0
    %250 = vmatprep.subr.mxu0 0.0
    %251 = vmatpush1.msra.mxu0 0.0
    %252 = vmatprep.subr.mxu0 0.0
    %253 = vmatpush1.msra.mxu0 0.0
    %254 = vmatprep.subr.mxu0 0.0
    %255 = vmatpush1.msra.mxu0 0.0
    %256 = vmatprep.subr.mxu0 0.0
    %257 = vmatpush1.msra.mxu0 0.0
    %258 = vmatprep.subr.mxu0 0.0
    %259 = vmatpush1.msra.mxu0 0.0
    %260 = vmatprep.subr.mxu0 0.0
    %261 = vmatpush1.msra.mxu0 0.0
    %262 = vmatprep.subr.mxu0 0.0
    %263 = vmatpush1.msra.mxu0 0.0
    %264 = vmatprep.subr.mxu0 0.0
    %265 = vmatpush1.msra.mxu0 0.0
    %266 = vmatprep.subr.mxu0 0.0
    %267 = vmatpush1.msra.mxu0 0.0
    %268 = vmatprep.subr.mxu0 0.0
    %269 = vmatpush1.msra.mxu0 0.0
    %270 = vmatprep.subr.mxu0 0.0
    %271 = vmatpush1.msra.mxu0 0.0
    %272 = vmatprep.subr.mxu0 0.0
    %273 = vmatpush1.msra.mxu0 0.0
    %274 = vmatprep.subr.mxu0 0.0
    %275 = vmatpush1.msra.mxu0 0.0
    %276 = vmatprep.subr.mxu0 0.0
    %277 = vmatpush1.msra.mxu0 0.0
    %278 = vmatprep.subr.mxu0 0.0
    %279 = vmatpush1.msra.mxu0 0.0
    %280 = vmatprep.mubr.f32.mxu0 0.0
    %281 = vmatmul.mubr.f32.gmra.mrb[0].mxu0 %v214
    %v282 = vpop.f32.mrb[0].mxu0
    %v283 = vadd.f32 0.0, %v282
    %v284 = vpop.f32.mrb[0].mxu0
    %285 = vdwg.mxu0
    %v286 = vadd.f32 %v212, %v283
    %v287 = vxor.u32 %v286, 2147483648
    %v288 = vmul.f32 %v287, 1.442695
    %v289 = vpow.pop %v288
    %v290 = vadd.f32 %v289, 1.0
    %v291 = vrcp.pop %v290
    %v292 = vmul.f32 1.0, %v291
    %v293 = vtanh.pop %v286
    %295 = vrot.lane.b32.xlu0 %v211, 32
    %v296 = vpop.permute.xlu0 %295
    %v298 = vmul.f32 %v292, %v296
    %300 = vrot.lane.b32.xlu0 %v293, 64
    %v301 = vpop.permute.xlu0 %300
    %v303 = vmul.f32 %v292, %v301
    %305 = vrot.lane.b32.xlu0 %v303, 32
    %v306 = vpop.permute.xlu0 %305
    %v308 = vadd.f32 %v298, %v306
    %v309 = vtanh.pop %v308
    %311 = vrot.lane.b32.xlu0 %v309, 64
    %v312 = vpop.permute.xlu0 %311
    %v314 = vmul.f32 %v292, %v312
    %p315 = scmp.lt.s32.totalorder %s209, 8
    %s316 = scalar_select %p315, 1, 0
    %v317 = vstv %s316
    %vm318 = vcmp.eq.s32.totalorder %v317, 1
    %319 = vrot.lane.b32.xlu0 %v210, 96
    %v320 = vpop.permute.xlu0 %319
    %v322 = vsel %vm318, %v314, %v320
    %v323 = vsel %vm318, %v308, %v296
    %s324 = scalar_lea.vmem [#allocation4], 8
    %v325 = vld [vmem:[%s324] sm:$0xff]
    %327 = vrot.lane.b32.xlu0 %v322, 32
    %v328 = vpop.permute.xlu0 %327
    %v329 = vsel %vm119, %v328, 0
    %331 = vmatprep.subr.mxu0 0.0
    %332 = vmatpush1.msra.mxu0 %v205
    %333 = vmatprep.subr.mxu0 0.0
    %334 = vmatpush1.msra.mxu0 %v206
    %335 = vmatprep.subr.mxu0 0.0
    %336 = vmatpush1.msra.mxu0 %v207
    %337 = vmatprep.subr.mxu0 0.0
    %338 = vmatpush1.msra.mxu0 %v208
    %339 = vmatprep.subr.mxu0 0.0
    %340 = vmatpush1.msra.mxu0 0.0
    %341 = vmatprep.subr.mxu0 0.0
    %342 = vmatpush1.msra.mxu0 0.0
    %343 = vmatprep.subr.mxu0 0.0
    %344 = vmatpush1.msra.mxu0 0.0
    %345 = vmatprep.subr.mxu0 0.0
    %346 = vmatpush1.msra.mxu0 0.0
    %347 = vmatprep.subr.mxu0 0.0
    %348 = vmatpush1.msra.mxu0 0.0
    %349 = vmatprep.subr.mxu0 0.0
    %350 = vmatpush1.msra.mxu0 0.0
    %351 = vmatprep.subr.mxu0 0.0
    %352 = vmatpush1.msra.mxu0 0.0
    %353 = vmatprep.subr.mxu0 0.0
    %354 = vmatpush1.msra.mxu0 0.0
    %355 = vmatprep.subr.mxu0 0.0
    %356 = vmatpush1.msra.mxu0 0.0
    %357 = vmatprep.subr.mxu0 0.0
    %358 = vmatpush1.msra.mxu0 0.0
    %359 = vmatprep.subr.mxu0 0.0
    %360 = vmatpush1.msra.mxu0 0.0
    %361 = vmatprep.subr.mxu0 0.0
    %362 = vmatpush1.msra.mxu0 0.0
    %363 = vmatprep.subr.mxu0 0.0
    %364 = vmatpush1.msra.mxu0 0.0
    %365 = vmatprep.subr.mxu0 0.0
    %366 = vmatpush1.msra.mxu0 0.0
    %367 = vmatprep.subr.mxu0 0.0
    %368 = vmatpush1.msra.mxu0 0.0
    %369 = vmatprep.subr.mxu0 0.0
    %370 = vmatpush1.msra.mxu0 0.0
    %371 = vmatprep.subr.mxu0 0.0
    %372 = vmatpush1.msra.mxu0 0.0
    %373 = vmatprep.subr.mxu0 0.0
    %374 = vmatpush1.msra.mxu0 0.0
    %375 = vmatprep.subr.mxu0 0.0
    %376 = vmatpush1.msra.mxu0 0.0
    %377 = vmatprep.subr.mxu0 0.0
    %378 = vmatpush1.msra.mxu0 0.0
    %379 = vmatprep.subr.mxu0 0.0
    %380 = vmatpush1.msra.mxu0 0.0
    %381 = vmatprep.subr.mxu0 0.0
    %382 = vmatpush1.msra.mxu0 0.0
    %383 = vmatprep.subr.mxu0 0.0
    %384 = vmatpush1.msra.mxu0 0.0
    %385 = vmatprep.subr.mxu0 0.0
    %386 = vmatpush1.msra.mxu0 0.0
    %387 = vmatprep.subr.mxu0 0.0
    %388 = vmatpush1.msra.mxu0 0.0
    %389 = vmatprep.subr.mxu0 0.0
    %390 = vmatpush1.msra.mxu0 0.0
    %391 = vmatprep.subr.mxu0 0.0
    %392 = vmatpush1.msra.mxu0 0.0
    %393 = vmatprep.subr.mxu0 0.0
    %394 = vmatpush1.msra.mxu0 0.0
    %395 = vmatprep.mubr.f32.mxu0 0.0
    %396 = vmatmul.mubr.f32.gmra.mrb[0].mxu0 %v329
    %v397 = vpop.f32.mrb[0].mxu0
    %v398 = vadd.f32 0.0, %v397
    %v399 = vpop.f32.mrb[0].mxu0
    %400 = vdwg.mxu0
    %v401 = vadd.f32 %v325, %v398
    %v402 = vxor.u32 %v401, 2147483648
    %v403 = vmul.f32 %v402, 1.442695
    %v404 = vpow.pop %v403
    %v405 = vadd.f32 %v404, 1.0
    %v406 = vrcp.pop %v405
    %v407 = vmul.f32 1.0, %v406
    %v408 = vtanh.pop %v401
    %v409 = vmul.f32 %v407, %v323
    %411 = vrot.lane.b32.xlu0 %v408, 64
    %v412 = vpop.permute.xlu0 %411
    %v414 = vmul.f32 %v407, %v412
    %416 = vrot.lane.b32.xlu0 %v414, 32
    %v417 = vpop.permute.xlu0 %416
    %v419 = vadd.f32 %v409, %v417
    %v420 = vtanh.pop %v419
    %422 = vrot.lane.b32.xlu0 %v420, 64
    %v423 = vpop.permute.xlu0 %422
    %v425 = vmul.f32 %v407, %v423
    %s426 = sadd.s32 %s209, 1
    %p427 = scmp.lt.s32.totalorder %s426, 8
    %s428 = scalar_select %p427, 1, 0
    %v429 = vstv %s428
    %vm430 = vcmp.eq.s32.totalorder %v429, 1
    %v431 = vsel %vm430, %v425, %v322
    %v432 = vsel %vm430, %v419, %v323
    %s433 = scalar_lea.vmem [#allocation4], 16
    %v434 = vld [vmem:[%s433] sm:$0xff]
    %436 = vrot.lane.b32.xlu0 %v431, 32
    %v437 = vpop.permute.xlu0 %436
    %v438 = vsel %vm119, %v437, 0
    %440 = vmatprep.subr.mxu0 0.0
    %441 = vmatpush1.msra.mxu0 %v205
    %442 = vmatprep.subr.mxu0 0.0
    %443 = vmatpush1.msra.mxu0 %v206
    %444 = vmatprep.subr.mxu0 0.0
    %445 = vmatpush1.msra.mxu0 %v207
    %446 = vmatprep.subr.mxu0 0.0
    %447 = vmatpush1.msra.mxu0 %v208
    %448 = vmatprep.subr.mxu0 0.0
    %449 = vmatpush1.msra.mxu0 0.0
    %450 = vmatprep.subr.mxu0 0.0
    %451 = vmatpush1.msra.mxu0 0.0
    %452 = vmatprep.subr.mxu0 0.0
    %453 = vmatpush1.msra.mxu0 0.0
    %454 = vmatprep.subr.mxu0 0.0
    %455 = vmatpush1.msra.mxu0 0.0
    %456 = vmatprep.subr.mxu0 0.0
    %457 = vmatpush1.msra.mxu0 0.0
    %458 = vmatprep.subr.mxu0 0.0
    %459 = vmatpush1.msra.mxu0 0.0
    %460 = vmatprep.subr.mxu0 0.0
    %461 = vmatpush1.msra.mxu0 0.0
    %462 = vmatprep.subr.mxu0 0.0
    %463 = vmatpush1.msra.mxu0 0.0
    %464 = vmatprep.subr.mxu0 0.0
    %465 = vmatpush1.msra.mxu0 0.0
    %466 = vmatprep.subr.mxu0 0.0
    %467 = vmatpush1.msra.mxu0 0.0
    %468 = vmatprep.subr.mxu0 0.0
    %469 = vmatpush1.msra.mxu0 0.0
    %470 = vmatprep.subr.mxu0 0.0
    %471 = vmatpush1.msra.mxu0 0.0
    %472 = vmatprep.subr.mxu0 0.0
    %473 = vmatpush1.msra.mxu0 0.0
    %474 = vmatprep.subr.mxu0 0.0
    %475 = vmatpush1.msra.mxu0 0.0
    %476 = vmatprep.subr.mxu0 0.0
    %477 = vmatpush1.msra.mxu0 0.0
    %478 = vmatprep.subr.mxu0 0.0
    %479 = vmatpush1.msra.mxu0 0.0
    %480 = vmatprep.subr.mxu0 0.0
    %481 = vmatpush1.msra.mxu0 0.0
    %482 = vmatprep.subr.mxu0 0.0
    %483 = vmatpush1.msra.mxu0 0.0
    %484 = vmatprep.subr.mxu0 0.0
    %485 = vmatpush1.msra.mxu0 0.0
    %486 = vmatprep.subr.mxu0 0.0
    %487 = vmatpush1.msra.mxu0 0.0
    %488 = vmatprep.subr.mxu0 0.0
    %489 = vmatpush1.msra.mxu0 0.0
    %490 = vmatprep.subr.mxu0 0.0
    %491 = vmatpush1.msra.mxu0 0.0
    %492 = vmatprep.subr.mxu0 0.0
    %493 = vmatpush1.msra.mxu0 0.0
    %494 = vmatprep.subr.mxu0 0.0
    %495 = vmatpush1.msra.mxu0 0.0
    %496 = vmatprep.subr.mxu0 0.0
    %497 = vmatpush1.msra.mxu0 0.0
    %498 = vmatprep.subr.mxu0 0.0
    %499 = vmatpush1.msra.mxu0 0.0
    %500 = vmatprep.subr.mxu0 0.0
    %501 = vmatpush1.msra.mxu0 0.0
    %502 = vmatprep.subr.mxu0 0.0
    %503 = vmatpush1.msra.mxu0 0.0
    %504 = vmatprep.mubr.f32.mxu0 0.0
    %505 = vmatmul.mubr.f32.gmra.mrb[0].mxu0 %v438
    %v506 = vpop.f32.mrb[0].mxu0
    %v507 = vadd.f32 0.0, %v506
    %v508 = vpop.f32.mrb[0].mxu0
    %509 = vdwg.mxu0
    %v510 = vadd.f32 %v434, %v507
    %v511 = vxor.u32 %v510, 2147483648
    %v512 = vmul.f32 %v511, 1.442695
    %v513 = vpow.pop %v512
    %v514 = vadd.f32 %v513, 1.0
    %v515 = vrcp.pop %v514
    %v516 = vmul.f32 1.0, %v515
    %v517 = vtanh.pop %v510
    %v518 = vmul.f32 %v516, %v432
    %520 = vrot.lane.b32.xlu0 %v517, 64
    %v521 = vpop.permute.xlu0 %520
    %v523 = vmul.f32 %v516, %v521
    %525 = vrot.lane.b32.xlu0 %v523, 32
    %v526 = vpop.permute.xlu0 %525
    %v528 = vadd.f32 %v518, %v526
    %v529 = vtanh.pop %v528
    %531 = vrot.lane.b32.xlu0 %v529, 64
    %v532 = vpop.permute.xlu0 %531
    %v534 = vmul.f32 %v516, %v532
    %s535 = sadd.s32 %s209, 2
    %p536 = scmp.lt.s32.totalorder %s535, 8
    %s537 = scalar_select %p536, 1, 0
    %v538 = vstv %s537
    %vm539 = vcmp.eq.s32.totalorder %v538, 1
    %v540 = vsel %vm539, %v534, %v431
    %v541 = vsel %vm539, %v528, %v432
    %s542 = scalar_lea.vmem [#allocation4], 24
    %v543 = vld [vmem:[%s542] sm:$0xff]
    %545 = vrot.lane.b32.xlu0 %v540, 32
    %v546 = vpop.permute.xlu0 %545
    %v547 = vsel %vm119, %v546, 0
    %549 = vmatprep.subr.mxu0 0.0
    %550 = vmatpush1.msra.mxu0 %v205
    %551 = vmatprep.subr.mxu0 0.0
    %552 = vmatpush1.msra.mxu0 %v206
    %553 = vmatprep.subr.mxu0 0.0
    %554 = vmatpush1.msra.mxu0 %v207
    %555 = vmatprep.subr.mxu0 0.0
    %556 = vmatpush1.msra.mxu0 %v208
    %557 = vmatprep.subr.mxu0 0.0
    %558 = vmatpush1.msra.mxu0 0.0
    %559 = vmatprep.subr.mxu0 0.0
    %560 = vmatpush1.msra.mxu0 0.0
    %561 = vmatprep.subr.mxu0 0.0
    %562 = vmatpush1.msra.mxu0 0.0
    %563 = vmatprep.subr.mxu0 0.0
    %564 = vmatpush1.msra.mxu0 0.0
    %565 = vmatprep.subr.mxu0 0.0
    %566 = vmatpush1.msra.mxu0 0.0
    %567 = vmatprep.subr.mxu0 0.0
    %568 = vmatpush1.msra.mxu0 0.0
    %569 = vmatprep.subr.mxu0 0.0
    %570 = vmatpush1.msra.mxu0 0.0
    %571 = vmatprep.subr.mxu0 0.0
    %572 = vmatpush1.msra.mxu0 0.0
    %573 = vmatprep.subr.mxu0 0.0
    %574 = vmatpush1.msra.mxu0 0.0
    %575 = vmatprep.subr.mxu0 0.0
    %576 = vmatpush1.msra.mxu0 0.0
    %577 = vmatprep.subr.mxu0 0.0
    %578 = vmatpush1.msra.mxu0 0.0
    %579 = vmatprep.subr.mxu0 0.0
    %580 = vmatpush1.msra.mxu0 0.0
    %581 = vmatprep.subr.mxu0 0.0
    %582 = vmatpush1.msra.mxu0 0.0
    %583 = vmatprep.subr.mxu0 0.0
    %584 = vmatpush1.msra.mxu0 0.0
    %585 = vmatprep.subr.mxu0 0.0
    %586 = vmatpush1.msra.mxu0 0.0
    %587 = vmatprep.subr.mxu0 0.0
    %588 = vmatpush1.msra.mxu0 0.0
    %589 = vmatprep.subr.mxu0 0.0
    %590 = vmatpush1.msra.mxu0 0.0
    %591 = vmatprep.subr.mxu0 0.0
    %592 = vmatpush1.msra.mxu0 0.0
    %593 = vmatprep.subr.mxu0 0.0
    %594 = vmatpush1.msra.mxu0 0.0
    %595 = vmatprep.subr.mxu0 0.0
    %596 = vmatpush1.msra.mxu0 0.0
    %597 = vmatprep.subr.mxu0 0.0
    %598 = vmatpush1.msra.mxu0 0.0
    %599 = vmatprep.subr.mxu0 0.0
    %600 = vmatpush1.msra.mxu0 0.0
    %601 = vmatprep.subr.mxu0 0.0
    %602 = vmatpush1.msra.mxu0 0.0
    %603 = vmatprep.subr.mxu0 0.0
    %604 = vmatpush1.msra.mxu0 0.0
    %605 = vmatprep.subr.mxu0 0.0
    %606 = vmatpush1.msra.mxu0 0.0
    %607 = vmatprep.subr.mxu0 0.0
    %608 = vmatpush1.msra.mxu0 0.0
    %609 = vmatprep.subr.mxu0 0.0
    %610 = vmatpush1.msra.mxu0 0.0
    %611 = vmatprep.subr.mxu0 0.0
    %612 = vmatpush1.msra.mxu0 0.0
    %613 = vmatprep.mubr.f32.mxu0 0.0
    %614 = vmatmul.mubr.f32.gmra.mrb[0].mxu0 %v547
    %v615 = vpop.f32.mrb[0].mxu0
    %v616 = vadd.f32 0.0, %v615
    %v617 = vpop.f32.mrb[0].mxu0
    %618 = vdwg.mxu0
    %v619 = vadd.f32 %v543, %v616
    %v620 = vxor.u32 %v619, 2147483648
    %v621 = vmul.f32 %v620, 1.442695
    %v622 = vpow.pop %v621
    %v623 = vadd.f32 %v622, 1.0
    %v624 = vrcp.pop %v623
    %v625 = vmul.f32 1.0, %v624
    %v626 = vtanh.pop %v619
    %v627 = vmul.f32 %v625, %v541
    %629 = vrot.lane.b32.xlu0 %v626, 64
    %v630 = vpop.permute.xlu0 %629
    %v632 = vmul.f32 %v625, %v630
    %634 = vrot.lane.b32.xlu0 %v632, 32
    %v635 = vpop.permute.xlu0 %634
    %v637 = vadd.f32 %v627, %v635
    %v638 = vtanh.pop %v637
    %640 = vrot.lane.b32.xlu0 %v638, 64
    %v641 = vpop.permute.xlu0 %640
    %v643 = vmul.f32 %v625, %v641
    %s644 = sadd.s32 %s209, 3
    %p645 = scmp.lt.s32.totalorder %s644, 8
    %s646 = scalar_select %p645, 1, 0
    %v647 = vstv %s646
    %vm648 = vcmp.eq.s32.totalorder %v647, 1
    %v649 = vsel %vm648, %v643, %v540
    %v650 = vsel %vm648, %v637, %v541
    %s651 = scalar_lea.vmem [#allocation4], 32
    %v652 = vld [vmem:[%s651] sm:$0xff]
    %654 = vrot.lane.b32.xlu0 %v649, 32
    %v655 = vpop.permute.xlu0 %654
    %v656 = vsel %vm119, %v655, 0
    %658 = vmatprep.subr.mxu0 0.0
    %659 = vmatpush1.msra.mxu0 %v205
    %660 = vmatprep.subr.mxu0 0.0
    %661 = vmatpush1.msra.mxu0 %v206
    %662 = vmatprep.subr.mxu0 0.0
    %663 = vmatpush1.msra.mxu0 %v207
    %664 = vmatprep.subr.mxu0 0.0
    %665 = vmatpush1.msra.mxu0 %v208
    %666 = vmatprep.subr.mxu0 0.0
    %667 = vmatpush1.msra.mxu0 0.0
    %668 = vmatprep.subr.mxu0 0.0
    %669 = vmatpush1.msra.mxu0 0.0
    %670 = vmatprep.subr.mxu0 0.0
    %671 = vmatpush1.msra.mxu0 0.0
    %672 = vmatprep.subr.mxu0 0.0
    %673 = vmatpush1.msra.mxu0 0.0
    %674 = vmatprep.subr.mxu0 0.0
    %675 = vmatpush1.msra.mxu0 0.0
    %676 = vmatprep.subr.mxu0 0.0
    %677 = vmatpush1.msra.mxu0 0.0
    %678 = vmatprep.subr.mxu0 0.0
    %679 = vmatpush1.msra.mxu0 0.0
    %680 = vmatprep.subr.mxu0 0.0
    %681 = vmatpush1.msra.mxu0 0.0
    %682 = vmatprep.subr.mxu0 0.0
    %683 = vmatpush1.msra.mxu0 0.0
    %684 = vmatprep.subr.mxu0 0.0
    %685 = vmatpush1.msra.mxu0 0.0
    %686 = vmatprep.subr.mxu0 0.0
    %687 = vmatpush1.msra.mxu0 0.0
    %688 = vmatprep.subr.mxu0 0.0
    %689 = vmatpush1.msra.mxu0 0.0
    %690 = vmatprep.subr.mxu0 0.0
    %691 = vmatpush1.msra.mxu0 0.0
    %692 = vmatprep.subr.mxu0 0.0
    %693 = vmatpush1.msra.mxu0 0.0
    %694 = vmatprep.subr.mxu0 0.0
    %695 = vmatpush1.msra.mxu0 0.0
    %696 = vmatprep.subr.mxu0 0.0
    %697 = vmatpush1.msra.mxu0 0.0
    %698 = vmatprep.subr.mxu0 0.0
    %699 = vmatpush1.msra.mxu0 0.0
    %700 = vmatprep.subr.mxu0 0.0
    %701 = vmatpush1.msra.mxu0 0.0
    %702 = vmatprep.subr.mxu0 0.0
    %703 = vmatpush1.msra.mxu0 0.0
    %704 = vmatprep.subr.mxu0 0.0
    %705 = vmatpush1.msra.mxu0 0.0
    %706 = vmatprep.subr.mxu0 0.0
    %707 = vmatpush1.msra.mxu0 0.0
    %708 = vmatprep.subr.mxu0 0.0
    %709 = vmatpush1.msra.mxu0 0.0
    %710 = vmatprep.subr.mxu0 0.0
    %711 = vmatpush1.msra.mxu0 0.0
    %712 = vmatprep.subr.mxu0 0.0
    %713 = vmatpush1.msra.mxu0 0.0
    %714 = vmatprep.subr.mxu0 0.0
    %715 = vmatpush1.msra.mxu0 0.0
    %716 = vmatprep.subr.mxu0 0.0
    %717 = vmatpush1.msra.mxu0 0.0
    %718 = vmatprep.subr.mxu0 0.0
    %719 = vmatpush1.msra.mxu0 0.0
    %720 = vmatprep.subr.mxu0 0.0
    %721 = vmatpush1.msra.mxu0 0.0
    %722 = vmatprep.mubr.f32.mxu0 0.0
    %723 = vmatmul.mubr.f32.gmra.mrb[0].mxu0 %v656
    %v724 = vpop.f32.mrb[0].mxu0
    %v725 = vadd.f32 0.0, %v724
    %v726 = vpop.f32.mrb[0].mxu0
    %727 = vdwg.mxu0
    %v728 = vadd.f32 %v652, %v725
    %v729 = vxor.u32 %v728, 2147483648
    %v730 = vmul.f32 %v729, 1.442695
    %v731 = vpow.pop %v730
    %v732 = vadd.f32 %v731, 1.0
    %v733 = vrcp.pop %v732
    %v734 = vmul.f32 1.0, %v733
    %v735 = vtanh.pop %v728
    %v736 = vmul.f32 %v734, %v650
    %738 = vrot.lane.b32.xlu0 %v735, 64
    %v739 = vpop.permute.xlu0 %738
    %v741 = vmul.f32 %v734, %v739
    %743 = vrot.lane.b32.xlu0 %v741, 32
    %v744 = vpop.permute.xlu0 %743
    %v746 = vadd.f32 %v736, %v744
    %v747 = vtanh.pop %v746
    %749 = vrot.lane.b32.xlu0 %v747, 64
    %v750 = vpop.permute.xlu0 %749
    %v752 = vmul.f32 %v734, %v750
    %s753 = sadd.s32 %s209, 4
    %p754 = scmp.lt.s32.totalorder %s753, 8
    %s755 = scalar_select %p754, 1, 0
    %v756 = vstv %s755
    %vm757 = vcmp.eq.s32.totalorder %v756, 1
    %v758 = vsel %vm757, %v752, %v649
    %v759 = vsel %vm757, %v746, %v650
    %s760 = scalar_lea.vmem [#allocation4], 40
    %v761 = vld [vmem:[%s760] sm:$0xff]
    %763 = vrot.lane.b32.xlu0 %v758, 32
    %v764 = vpop.permute.xlu0 %763
    %v765 = vsel %vm119, %v764, 0
    %767 = vmatprep.subr.mxu0 0.0
    %768 = vmatpush1.msra.mxu0 %v205
    %769 = vmatprep.subr.mxu0 0.0
    %770 = vmatpush1.msra.mxu0 %v206
    %771 = vmatprep.subr.mxu0 0.0
    %772 = vmatpush1.msra.mxu0 %v207
    %773 = vmatprep.subr.mxu0 0.0
    %774 = vmatpush1.msra.mxu0 %v208
    %775 = vmatprep.subr.mxu0 0.0
    %776 = vmatpush1.msra.mxu0 0.0
    %777 = vmatprep.subr.mxu0 0.0
    %778 = vmatpush1.msra.mxu0 0.0
    %779 = vmatprep.subr.mxu0 0.0
    %780 = vmatpush1.msra.mxu0 0.0
    %781 = vmatprep.subr.mxu0 0.0
    %782 = vmatpush1.msra.mxu0 0.0
    %783 = vmatprep.subr.mxu0 0.0
    %784 = vmatpush1.msra.mxu0 0.0
    %785 = vmatprep.subr.mxu0 0.0
    %786 = vmatpush1.msra.mxu0 0.0
    %787 = vmatprep.subr.mxu0 0.0
    %788 = vmatpush1.msra.mxu0 0.0
    %789 = vmatprep.subr.mxu0 0.0
    %790 = vmatpush1.msra.mxu0 0.0
    %791 = vmatprep.subr.mxu0 0.0
    %792 = vmatpush1.msra.mxu0 0.0
    %793 = vmatprep.subr.mxu0 0.0
    %794 = vmatpush1.msra.mxu0 0.0
    %795 = vmatprep.subr.mxu0 0.0
    %796 = vmatpush1.msra.mxu0 0.0
    %797 = vmatprep.subr.mxu0 0.0
    %798 = vmatpush1.msra.mxu0 0.0
    %799 = vmatprep.subr.mxu0 0.0
    %800 = vmatpush1.msra.mxu0 0.0
    %801 = vmatprep.subr.mxu0 0.0
    %802 = vmatpush1.msra.mxu0 0.0
    %803 = vmatprep.subr.mxu0 0.0
    %804 = vmatpush1.msra.mxu0 0.0
    %805 = vmatprep.subr.mxu0 0.0
    %806 = vmatpush1.msra.mxu0 0.0
    %807 = vmatprep.subr.mxu0 0.0
    %808 = vmatpush1.msra.mxu0 0.0
    %809 = vmatprep.subr.mxu0 0.0
    %810 = vmatpush1.msra.mxu0 0.0
    %811 = vmatprep.subr.mxu0 0.0
    %812 = vmatpush1.msra.mxu0 0.0
    %813 = vmatprep.subr.mxu0 0.0
    %814 = vmatpush1.msra.mxu0 0.0
    %815 = vmatprep.subr.mxu0 0.0
    %816 = vmatpush1.msra.mxu0 0.0
    %817 = vmatprep.subr.mxu0 0.0
    %818 = vmatpush1.msra.mxu0 0.0
    %819 = vmatprep.subr.mxu0 0.0
    %820 = vmatpush1.msra.mxu0 0.0
    %821 = vmatprep.subr.mxu0 0.0
    %822 = vmatpush1.msra.mxu0 0.0
    %823 = vmatprep.subr.mxu0 0.0
    %824 = vmatpush1.msra.mxu0 0.0
    %825 = vmatprep.subr.mxu0 0.0
    %826 = vmatpush1.msra.mxu0 0.0
    %827 = vmatprep.subr.mxu0 0.0
    %828 = vmatpush1.msra.mxu0 0.0
    %829 = vmatprep.subr.mxu0 0.0
    %830 = vmatpush1.msra.mxu0 0.0
    %831 = vmatprep.mubr.f32.mxu0 0.0
    %832 = vmatmul.mubr.f32.gmra.mrb[0].mxu0 %v765
    %v833 = vpop.f32.mrb[0].mxu0
    %v834 = vadd.f32 0.0, %v833
    %v835 = vpop.f32.mrb[0].mxu0
    %836 = vdwg.mxu0
    %v837 = vadd.f32 %v761, %v834
    %v838 = vxor.u32 %v837, 2147483648
    %v839 = vmul.f32 %v838, 1.442695
    %v840 = vpow.pop %v839
    %v841 = vadd.f32 %v840, 1.0
    %v842 = vrcp.pop %v841
    %v843 = vmul.f32 1.0, %v842
    %v844 = vtanh.pop %v837
    %v845 = vmul.f32 %v843, %v759
    %847 = vrot.lane.b32.xlu0 %v844, 64
    %v848 = vpop.permute.xlu0 %847
    %v850 = vmul.f32 %v843, %v848
    %852 = vrot.lane.b32.xlu0 %v850, 32
    %v853 = vpop.permute.xlu0 %852
    %v855 = vadd.f32 %v845, %v853
    %v856 = vtanh.pop %v855
    %858 = vrot.lane.b32.xlu0 %v856, 64
    %v859 = vpop.permute.xlu0 %858
    %v861 = vmul.f32 %v843, %v859
    %s862 = sadd.s32 %s209, 5
    %p863 = scmp.lt.s32.totalorder %s862, 8
    %s864 = scalar_select %p863, 1, 0
    %v865 = vstv %s864
    %vm866 = vcmp.eq.s32.totalorder %v865, 1
    %v867 = vsel %vm866, %v861, %v758
    %v868 = vsel %vm866, %v855, %v759
    %s869 = scalar_lea.vmem [#allocation4], 48
    %v870 = vld [vmem:[%s869] sm:$0xff]
    %872 = vrot.lane.b32.xlu0 %v867, 32
    %v873 = vpop.permute.xlu0 %872
    %v874 = vsel %vm119, %v873, 0
    %876 = vmatprep.subr.mxu0 0.0
    %877 = vmatpush1.msra.mxu0 %v205
    %878 = vmatprep.subr.mxu0 0.0
    %879 = vmatpush1.msra.mxu0 %v206
    %880 = vmatprep.subr.mxu0 0.0
    %881 = vmatpush1.msra.mxu0 %v207
    %882 = vmatprep.subr.mxu0 0.0
    %883 = vmatpush1.msra.mxu0 %v208
    %884 = vmatprep.subr.mxu0 0.0
    %885 = vmatpush1.msra.mxu0 0.0
    %886 = vmatprep.subr.mxu0 0.0
    %887 = vmatpush1.msra.mxu0 0.0
    %888 = vmatprep.subr.mxu0 0.0
    %889 = vmatpush1.msra.mxu0 0.0
    %890 = vmatprep.subr.mxu0 0.0
    %891 = vmatpush1.msra.mxu0 0.0
    %892 = vmatprep.subr.mxu0 0.0
    %893 = vmatpush1.msra.mxu0 0.0
    %894 = vmatprep.subr.mxu0 0.0
    %895 = vmatpush1.msra.mxu0 0.0
    %896 = vmatprep.subr.mxu0 0.0
    %897 = vmatpush1.msra.mxu0 0.0
    %898 = vmatprep.subr.mxu0 0.0
    %899 = vmatpush1.msra.mxu0 0.0
    %900 = vmatprep.subr.mxu0 0.0
    %901 = vmatpush1.msra.mxu0 0.0
    %902 = vmatprep.subr.mxu0 0.0
    %903 = vmatpush1.msra.mxu0 0.0
    %904 = vmatprep.subr.mxu0 0.0
    %905 = vmatpush1.msra.mxu0 0.0
    %906 = vmatprep.subr.mxu0 0.0
    %907 = vmatpush1.msra.mxu0 0.0
    %908 = vmatprep.subr.mxu0 0.0
    %909 = vmatpush1.msra.mxu0 0.0
    %910 = vmatprep.subr.mxu0 0.0
    %911 = vmatpush1.msra.mxu0 0.0
    %912 = vmatprep.subr.mxu0 0.0
    %913 = vmatpush1.msra.mxu0 0.0
    %914 = vmatprep.subr.mxu0 0.0
    %915 = vmatpush1.msra.mxu0 0.0
    %916 = vmatprep.subr.mxu0 0.0
    %917 = vmatpush1.msra.mxu0 0.0
    %918 = vmatprep.subr.mxu0 0.0
    %919 = vmatpush1.msra.mxu0 0.0
    %920 = vmatprep.subr.mxu0 0.0
    %921 = vmatpush1.msra.mxu0 0.0
    %922 = vmatprep.subr.mxu0 0.0
    %923 = vmatpush1.msra.mxu0 0.0
    %924 = vmatprep.subr.mxu0 0.0
    %925 = vmatpush1.msra.mxu0 0.0
    %926 = vmatprep.subr.mxu0 0.0
    %927 = vmatpush1.msra.mxu0 0.0
    %928 = vmatprep.subr.mxu0 0.0
    %929 = vmatpush1.msra.mxu0 0.0
    %930 = vmatprep.subr.mxu0 0.0
    %931 = vmatpush1.msra.mxu0 0.0
    %932 = vmatprep.subr.mxu0 0.0
    %933 = vmatpush1.msra.mxu0 0.0
    %934 = vmatprep.subr.mxu0 0.0
    %935 = vmatpush1.msra.mxu0 0.0
    %936 = vmatprep.subr.mxu0 0.0
    %937 = vmatpush1.msra.mxu0 0.0
    %938 = vmatprep.subr.mxu0 0.0
    %939 = vmatpush1.msra.mxu0 0.0
    %940 = vmatprep.mubr.f32.mxu0 0.0
    %941 = vmatmul.mubr.f32.gmra.mrb[0].mxu0 %v874
    %v942 = vpop.f32.mrb[0].mxu0
    %v943 = vadd.f32 0.0, %v942
    %v944 = vpop.f32.mrb[0].mxu0
    %945 = vdwg.mxu0
    %v946 = vadd.f32 %v870, %v943
    %v947 = vxor.u32 %v946, 2147483648
    %v948 = vmul.f32 %v947, 1.442695
    %v949 = vpow.pop %v948
    %v950 = vadd.f32 %v949, 1.0
    %v951 = vrcp.pop %v950
    %v952 = vmul.f32 1.0, %v951
    %v953 = vtanh.pop %v946
    %v954 = vmul.f32 %v952, %v868
    %956 = vrot.lane.b32.xlu0 %v953, 64
    %v957 = vpop.permute.xlu0 %956
    %v959 = vmul.f32 %v952, %v957
    %961 = vrot.lane.b32.xlu0 %v959, 32
    %v962 = vpop.permute.xlu0 %961
    %v964 = vadd.f32 %v954, %v962
    %v965 = vtanh.pop %v964
    %967 = vrot.lane.b32.xlu0 %v965, 64
    %v968 = vpop.permute.xlu0 %967
    %v970 = vmul.f32 %v952, %v968
    %s971 = sadd.s32 %s209, 6
    %p972 = scmp.lt.s32.totalorder %s971, 8
    %s973 = scalar_select %p972, 1, 0
    %v974 = vstv %s973
    %vm975 = vcmp.eq.s32.totalorder %v974, 1
    %v976 = vsel %vm975, %v970, %v867
    %v977 = vsel %vm975, %v964, %v868
    %s978 = scalar_lea.vmem [#allocation4], 56
    %v979 = vld [vmem:[%s978] sm:$0xff]
    %981 = vrot.lane.b32.xlu0 %v976, 32
    %v982 = vpop.permute.xlu0 %981
    %v983 = vsel %vm119, %v982, 0
    %985 = vmatprep.subr.mxu0 0.0
    %986 = vmatpush1.msra.mxu0 %v205
    %987 = vmatprep.subr.mxu0 0.0
    %988 = vmatpush1.msra.mxu0 %v206
    %989 = vmatprep.subr.mxu0 0.0
    %990 = vmatpush1.msra.mxu0 %v207
    %991 = vmatprep.subr.mxu0 0.0
    %992 = vmatpush1.msra.mxu0 %v208
    %993 = vmatprep.subr.mxu0 0.0
    %994 = vmatpush1.msra.mxu0 0.0
    %995 = vmatprep.subr.mxu0 0.0
    %996 = vmatpush1.msra.mxu0 0.0
    %997 = vmatprep.subr.mxu0 0.0
    %998 = vmatpush1.msra.mxu0 0.0
    %999 = vmatprep.subr.mxu0 0.0
    %1000 = vmatpush1.msra.mxu0 0.0
    %1001 = vmatprep.subr.mxu0 0.0
    %1002 = vmatpush1.msra.mxu0 0.0
    %1003 = vmatprep.subr.mxu0 0.0
    %1004 = vmatpush1.msra.mxu0 0.0
    %1005 = vmatprep.subr.mxu0 0.0
    %1006 = vmatpush1.msra.mxu0 0.0
    %1007 = vmatprep.subr.mxu0 0.0
    %1008 = vmatpush1.msra.mxu0 0.0
    %1009 = vmatprep.subr.mxu0 0.0
    %1010 = vmatpush1.msra.mxu0 0.0
    %1011 = vmatprep.subr.mxu0 0.0
    %1012 = vmatpush1.msra.mxu0 0.0
    %1013 = vmatprep.subr.mxu0 0.0
    %1014 = vmatpush1.msra.mxu0 0.0
    %1015 = vmatprep.subr.mxu0 0.0
    %1016 = vmatpush1.msra.mxu0 0.0
    %1017 = vmatprep.subr.mxu0 0.0
    %1018 = vmatpush1.msra.mxu0 0.0
    %1019 = vmatprep.subr.mxu0 0.0
    %1020 = vmatpush1.msra.mxu0 0.0
    %1021 = vmatprep.subr.mxu0 0.0
    %1022 = vmatpush1.msra.mxu0 0.0
    %1023 = vmatprep.subr.mxu0 0.0
    %1024 = vmatpush1.msra.mxu0 0.0
    %1025 = vmatprep.subr.mxu0 0.0
    %1026 = vmatpush1.msra.mxu0 0.0
    %1027 = vmatprep.subr.mxu0 0.0
    %1028 = vmatpush1.msra.mxu0 0.0
    %1029 = vmatprep.subr.mxu0 0.0
    %1030 = vmatpush1.msra.mxu0 0.0
    %1031 = vmatprep.subr.mxu0 0.0
    %1032 = vmatpush1.msra.mxu0 0.0
    %1033 = vmatprep.subr.mxu0 0.0
    %1034 = vmatpush1.msra.mxu0 0.0
    %1035 = vmatprep.subr.mxu0 0.0
    %1036 = vmatpush1.msra.mxu0 0.0
    %1037 = vmatprep.subr.mxu0 0.0
    %1038 = vmatpush1.msra.mxu0 0.0
    %1039 = vmatprep.subr.mxu0 0.0
    %1040 = vmatpush1.msra.mxu0 0.0
    %1041 = vmatprep.subr.mxu0 0.0
    %1042 = vmatpush1.msra.mxu0 0.0
    %1043 = vmatprep.subr.mxu0 0.0
    %1044 = vmatpush1.msra.mxu0 0.0
    %1045 = vmatprep.subr.mxu0 0.0
    %1046 = vmatpush1.msra.mxu0 0.0
    %1047 = vmatprep.subr.mxu0 0.0
    %1048 = vmatpush1.msra.mxu0 0.0
    %1049 = vmatprep.mubr.f32.mxu0 0.0
    %1050 = vmatmul.mubr.f32.gmra.mrb[0].mxu0 %v983
    %v1051 = vpop.f32.mrb[0].mxu0
    %v1052 = vadd.f32 0.0, %v1051
    %v1053 = vpop.f32.mrb[0].mxu0
    %1054 = vdwg.mxu0
    %v1055 = vadd.f32 %v979, %v1052
    %v1056 = vxor.u32 %v1055, 2147483648
    %v1057 = vmul.f32 %v1056, 1.442695
    %v1058 = vpow.pop %v1057
    %v1059 = vadd.f32 %v1058, 1.0
    %v1060 = vrcp.pop %v1059
    %v1061 = vmul.f32 1.0, %v1060
    %v1062 = vtanh.pop %v1055
    %v1063 = vmul.f32 %v1061, %v977
    %1065 = vrot.lane.b32.xlu0 %v1062, 64
    %v1066 = vpop.permute.xlu0 %1065
    %v1068 = vmul.f32 %v1061, %v1066
    %1070 = vrot.lane.b32.xlu0 %v1068, 32
    %v1071 = vpop.permute.xlu0 %1070
    %v1073 = vadd.f32 %v1063, %v1071
    %v1074 = vtanh.pop %v1073
    %1076 = vrot.lane.b32.xlu0 %v1074, 64
    %v1077 = vpop.permute.xlu0 %1076
    %v1079 = vmul.f32 %v1061, %v1077
    %s1080 = sadd.s32 %s209, 7
    %p1081 = scmp.lt.s32.totalorder %s1080, 8
    %s1082 = scalar_select %p1081, 1, 0
    %v1083 = vstv %s1082
    %vm1084 = vcmp.eq.s32.totalorder %v1083, 1
    %v1085 = vsel %vm1084, %v1079, %v976
    %v1086 = vsel %vm1084, %v1073, %v977
    %1088 = vrot.lane.b32.xlu0 %v1085, 32
    %v1089 = vpop.permute.xlu0 %1088
    %1091 = vst.msk [vmem:[#allocation2] sm:$0xff] %vm119, %v1089
    %1093 = vrot.lane.b32.xlu0 %v1086, 96
    %v1094 = vpop.permute.xlu0 %1093
    %1096 = vst.msk [vmem:[#allocation3] sm:$0xff] %vm119, %v1094
    // Predicated region
    $region34: #{tpu_custom_call.1} parent=1 // pred_check
      %p1097 = pneg %p61
    $region35: #{tpu_custom_call.1} parent=1 // pred_check_branch
      %1099 = sbr.rel (%p1097) target = $region37
    $region36: #{tpu_custom_call.1} parent=1 // pred_region
      %v1100 = vld [vmem:[#allocation5] sm:$0xff]
      %v1101 = vld [vmem:[#allocation5 + $0x8] sm:$0xff]
      %v1102 = vld [vmem:[#allocation5 + $0x10] sm:$0xff]
      %v1103 = vld [vmem:[#allocation5 + $0x18] sm:$0xff]
      %v1104 = vld [vmem:[%s5] sm:$0x1]
      %v1106 = vlaneseq
      %v1107 = vshrl.u32 %v1106, 7
      %v1108 = vsub.s32 0, %v1107
      %v1109 = vrot.slane %v1104, %v1108
      %v1111 = vsel %vm119, %v1089, 0
      %1113 = vmatprep.subr.mxu0 0.0
      %1114 = vmatpush1.msra.mxu0 %v1100
      %1115 = vmatprep.subr.mxu0 0.0
      %1116 = vmatpush1.msra.mxu0 %v1101
      %1117 = vmatprep.subr.mxu0 0.0
      %1118 = vmatpush1.msra.mxu0 %v1102
      %1119 = vmatprep.subr.mxu0 0.0
      %1120 = vmatpush1.msra.mxu0 %v1103
      %1121 = vmatprep.subr.mxu0 0.0
      %1122 = vmatpush1.msra.mxu0 0.0
      %1123 = vmatprep.subr.mxu0 0.0
      %1124 = vmatpush1.msra.mxu0 0.0
      %1125 = vmatprep.subr.mxu0 0.0
      %1126 = vmatpush1.msra.mxu0 0.0
      %1127 = vmatprep.subr.mxu0 0.0
      %1128 = vmatpush1.msra.mxu0 0.0
      %1129 = vmatprep.subr.mxu0 0.0
      %1130 = vmatpush1.msra.mxu0 0.0
      %1131 = vmatprep.subr.mxu0 0.0
      %1132 = vmatpush1.msra.mxu0 0.0
      %1133 = vmatprep.subr.mxu0 0.0
      %1134 = vmatpush1.msra.mxu0 0.0
      %1135 = vmatprep.subr.mxu0 0.0
      %1136 = vmatpush1.msra.mxu0 0.0
      %1137 = vmatprep.subr.mxu0 0.0
      %1138 = vmatpush1.msra.mxu0 0.0
      %1139 = vmatprep.subr.mxu0 0.0
      %1140 = vmatpush1.msra.mxu0 0.0
      %1141 = vmatprep.subr.mxu0 0.0
      %1142 = vmatpush1.msra.mxu0 0.0
      %1143 = vmatprep.subr.mxu0 0.0
      %1144 = vmatpush1.msra.mxu0 0.0
      %1145 = vmatprep.subr.mxu0 0.0
      %1146 = vmatpush1.msra.mxu0 0.0
      %1147 = vmatprep.subr.mxu0 0.0
      %1148 = vmatpush1.msra.mxu0 0.0
      %1149 = vmatprep.subr.mxu0 0.0
      %1150 = vmatpush1.msra.mxu0 0.0
      %1151 = vmatprep.subr.mxu0 0.0
      %1152 = vmatpush1.msra.mxu0 0.0
      %1153 = vmatprep.subr.mxu0 0.0
      %1154 = vmatpush1.msra.mxu0 0.0
      %1155 = vmatprep.subr.mxu0 0.0
      %1156 = vmatpush1.msra.mxu0 0.0
      %1157 = vmatprep.subr.mxu0 0.0
      %1158 = vmatpush1.msra.mxu0 0.0
      %1159 = vmatprep.subr.mxu0 0.0
      %1160 = vmatpush1.msra.mxu0 0.0
      %1161 = vmatprep.subr.mxu0 0.0
      %1162 = vmatpush1.msra.mxu0 0.0
      %1163 = vmatprep.subr.mxu0 0.0
      %1164 = vmatpush1.msra.mxu0 0.0
      %1165 = vmatprep.subr.mxu0 0.0
      %1166 = vmatpush1.msra.mxu0 0.0
      %1167 = vmatprep.subr.mxu0 0.0
      %1168 = vmatpush1.msra.mxu0 0.0
      %1169 = vmatprep.subr.mxu0 0.0
      %1170 = vmatpush1.msra.mxu0 0.0
      %1171 = vmatprep.subr.mxu0 0.0
      %1172 = vmatpush1.msra.mxu0 0.0
      %1173 = vmatprep.subr.mxu0 0.0
      %1174 = vmatpush1.msra.mxu0 0.0
      %1175 = vmatprep.subr.mxu0 0.0
      %1176 = vmatpush1.msra.mxu0 0.0
      %1177 = vmatprep.mubr.f32.mxu0 0.0
      %1178 = vmatmul.mubr.f32.gmra.mrb[0].mxu0 %v1111
      %v1179 = vpop.f32.mrb[0].mxu0
      %v1180 = vadd.f32 %v1109, %v1179
      %v1181 = vpop.f32.mrb[0].mxu0
      %1182 = vdwg.mxu0
      %1183 = vst [vmem:[#allocation8] sm:$0xff] %v1180
    $region37: #{tpu_custom_call.1} parent=1 // pred_fallthru
      _
    // Predicated region
    $region38: #{tpu_custom_call.1} parent=1 // pred_check
      _
    $region39: #{tpu_custom_call.1} parent=1 // pred_check_branch
      %1185 = sbr.rel (0) target = $region41
    $region40: #{tpu_custom_call.1} parent=1 // pred_region
      %s1187 = ssub.s32 128, 128
      %1188 = vsyncadd [#allocation7], %s1187
      %s1190 = sshll.u32 [#allocation8], 4
      %s1191 = int_to_ptr.vmem [resolvable:$true] %s1190
      %1193 = dma.vmem_to_hbm [thread:$0]  %s1191, 128, %s6, [#allocation7]
    $region41: #{tpu_custom_call.1} parent=1 // pred_fallthru
      _
    // Predicated region
    $region42: #{tpu_custom_call.1} parent=1 // pred_check
      _
    $region43: #{tpu_custom_call.1} parent=1 // pred_check_branch
      %1195 = sbr.rel (0) target = $region45
    $region44: #{tpu_custom_call.1} parent=1 // pred_region
      %1196 = dma.done [#allocation7], 128
    $region45: #{tpu_custom_call.1} parent=1 // pred_fallthru
      _
    %1197 = vsyncpa [#allocation6], 1
    %1198 = vsyncpa [#allocation7], 1

</llo_original>
